<compile_context>
chip_gen: v7x
topology: tpu7x:2x2x1
jax: 0.10.0
libtpu: 0.0.40
codegen_flags: <defaults>
</compile_context>

<pallas_src>
import functools

import jax
import jax.numpy as jnp
from jax.experimental import pallas as pl
from jax.experimental.pallas import tpu as pltpu

VMEM = pltpu.MemorySpace.VMEM
SMEM = pltpu.MemorySpace.SMEM

# ----------------------------- config ---------------------------------------
VOCAB = 50
SEQ = 12
TXT_DIM = 32     # projection.textual_embedding_dim
VIS_DIM = 32     # projection.visual_embedding_dim
HID = 64         # projection.proj_hidden_dim
OUT = 32         # projection.proj_output_dim
BATCH = 8
IMG_C, IMG_H, IMG_W = 4, 16, 16
KH = KW = 3
KDIM = IMG_C * KH * KW           # 36 im2col taps per patch
NPATCH = IMG_H * IMG_W           # 256 patches per image
KPACK = 2                        # conv K-packing factor (K=72 <= 128: OK on v5e too)
PACKED_K = KPACK * KDIM          # 72
PACKED_ROWS = BATCH * NPATCH // KPACK


# ----------------------------- fused Pallas kernel ----------------------------

def _vicreg_fused_kernel(pooled_ref, pool_w_ref, pool_b_ref,
                         patch_hbm_ref, conv_w_ref, conv_b_ref,
                         w1_ref, b1_ref, g1_ref, be1_ref,
                         w2_ref, b2_ref, g2_ref, be2_ref,
                         w3_ref, b3_ref,
                         z_ref, loss_ref,
                         patch_vmem, dma_sem,
                         *, n, p, out_dim, sim_coeff, std_coeff, cov_coeff):
    f32 = jnp.float32

    # Kick off the bf16 patch DMA first so it overlaps the linguistic pooler
    # (single-shot kernel => no auto-pipelining to hide it otherwise).
    patch_cp = pltpu.make_async_copy(patch_hbm_ref, patch_vmem, dma_sem)
    patch_cp.start()

    # --- linguistic pooler: Linear + tanh (BERT-style pooler) ----------------
    ling_feat = jnp.tanh(
        jnp.dot(pooled_ref[...], pool_w_ref[...], preferred_element_type=f32)
        + pool_b_ref[...])                                          # (N, Dt)

    patch_cp.wait()

    # --- visual: 3x3 conv as a K-packed im2col matmul (bf16 in, f32 acc) -----
    # (N*P/2, 72) @ (72, 64): two patches per row against a 2x block-diagonal
    # conv weight -> half the vmatmul pushes, double output lane density.
    h = jnp.dot(patch_vmem[...], conv_w_ref[...],
                preferred_element_type=f32)                         # (N*P/2, 2E)
    h = jnp.maximum(h + conv_b_ref[...], 0.0)

    # Global sum pool per image: zero-copy reshape (splits only the
    # sublane-major leading dim) + sublane-axis sum on the VPU.
    hs = jnp.sum(h.reshape(n, p // KPACK, h.shape[-1]), axis=1)     # (N, 2E)

    # --- stacked projection heads (block-diagonal weights, 128-lane hidden) --
    # Linear -> BatchNorm1d (training stats, eps=1e-5) -> ReLU, twice, + Linear.
    # w1 consumes [ling_feat(32) || hs(64)]; its visual rows are duplicated for
    # the two packed conv halves and pre-scaled by 1/P, so the global average
    # pool / half-fold are absorbed into this matmul (no roll, no lane slice).
    def bn_relu(a, g, be):
        mu = jnp.mean(a, axis=0, keepdims=True)
        var = jnp.mean((a - mu) ** 2, axis=0, keepdims=True)
        return jnp.maximum((a - mu) * jax.lax.rsqrt(var + 1e-5) * g + be, 0.0)

    x = jnp.concatenate([ling_feat, hs], axis=-1)                   # (N, Dt+2E)
    h1 = bn_relu(jnp.dot(x, w1_ref[...], preferred_element_type=f32)
                 + b1_ref[...], g1_ref[...], be1_ref[...])          # (N, 2*HID)
    h2 = bn_relu(jnp.dot(h1, w2_ref[...], preferred_element_type=f32)
                 + b2_ref[...], g2_ref[...], be2_ref[...])          # (N, 2*HID)
    z = jnp.dot(h2, w3_ref[...], preferred_element_type=f32) + b3_ref[...]

    # Single lane-dense (N, 2*OUT) store; the wrapper slices ling / vis.
    z_ref[...] = z

    # --- VICReg loss on the joint 2*OUT-lane slab ------------------------------
    d2 = 2 * out_dim
    zl = z[:, :out_dim]                                             # linguistic
    zv = z[:, out_dim:]                                             # visual
    repr_loss = jnp.mean((zl - zv) ** 2)                            # invariance

    # Center the joint slab once; per-feature stats are exactly [x-stats||y-stats].
    zc = z - jnp.mean(z, axis=0, keepdims=True)
    var = jnp.sum(zc * zc, axis=0, keepdims=True) / (n - 1)         # (1, 2*OUT)
    # mean over the joint lanes == (mean_x + mean_y)/2 of the reference loss.
    std_loss = jnp.mean(jnp.maximum(1.0 - jnp.sqrt(var + 1e-4), 0.0))

    # One Gram; its two diagonal (OUT x OUT) blocks are cov_x / cov_y.
    dn = (((0,), (0,)), ((), ()))                     # contract over batch
    gram = jax.lax.dot_general(zc, zc, dn, preferred_element_type=f32) / (n - 1)
    r = jax.lax.broadcasted_iota(jnp.int32, (d2, d2), 0)
    c = jax.lax.broadcasted_iota(jnp.int32, (d2, d2), 1)
    blk = (r < out_dim) == (c < out_dim)              # static block-diag mask
    cov_sq = jnp.sum(jnp.where(blk, gram * gram, 0.0))
    # off-diag(cov)^2 sum = block-diag sum(cov^2) - sum(diag^2); diag == var.
    cov_loss = (cov_sq - jnp.sum(var * var)) / out_dim

    loss_ref[0, 0] = (sim_coeff * repr_loss + std_coeff * std_loss
                      + cov_coeff * cov_loss)


def vicreg_fused(pooled, patches_packed, params, *,
                 sim_coeff=25.0, std_coeff=25.0, cov_coeff=1.0):
    n = pooled.shape[0]
    assert n >= 2, "VICReg variance/covariance terms require batch >= 2"
    sp = params['proj']
    args = (pooled, params['pool_w'], params['pool_b'],
            patches_packed, params['conv_w'], params['conv_b'],
            sp['w1'], sp['b1'], sp['g1'], sp['be1'],
            sp['w2'], sp['b2'], sp['g2'], sp['be2'],
            sp['w3'], sp['b3'])
    in_specs = [pl.BlockSpec(memory_space=VMEM) for _ in args]
    in_specs[3] = pl.BlockSpec(memory_space=pl.ANY)   # patches: manual DMA
    kernel = functools.partial(
        _vicreg_fused_kernel, n=n, p=NPATCH, out_dim=OUT,
        sim_coeff=sim_coeff, std_coeff=std_coeff, cov_coeff=cov_coeff)
    z, loss = pl.pallas_call(
        kernel,
        out_shape=(jax.ShapeDtypeStruct((n, 2 * OUT), jnp.float32),
                   jax.ShapeDtypeStruct((1, 1), jnp.float32)),
        in_specs=in_specs,
        out_specs=(pl.BlockSpec(memory_space=VMEM),
                   pl.BlockSpec(memory_space=SMEM)),
        scratch_shapes=[pltpu.VMEM(patches_packed.shape, jnp.bfloat16),
                        pltpu.SemaphoreType.DMA(())],
        cost_estimate=pl.CostEstimate(flops=2_800_000, transcendentals=700,
                                      bytes_accessed=220_000),
    )(*args)
    return z[:, :OUT], z[:, OUT:], loss[0, 0]


# ----------------------------- parameters & glue ------------------------------

def init_params(key):
    ks = jax.random.split(key, 5)

    def nrm(k, shape, scale=0.05):
        return (scale * jax.random.normal(k, shape)).astype(jnp.float32)

    def proj_params(k, din):
        k1, k2, k3, k4, k5, k6 = jax.random.split(k, 6)
        return dict(
            w1=nrm(k1, (din, HID)), b1=nrm(k2, (1, HID)),
            g1=jnp.ones((1, HID), jnp.float32), be1=jnp.zeros((1, HID), jnp.float32),
            w2=nrm(k3, (HID, HID)), b2=nrm(k4, (1, HID)),
            g2=jnp.ones((1, HID), jnp.float32), be2=jnp.zeros((1, HID), jnp.float32),
            w3=nrm(k5, (HID, OUT)), b3=nrm(k6, (1, OUT)),
        )

    def block_diag(a, b):
        top = jnp.concatenate([a, jnp.zeros((a.shape[0], b.shape[1]), a.dtype)], 1)
        bot = jnp.concatenate([jnp.zeros((b.shape[0], a.shape[1]), b.dtype), b], 1)
        return jnp.concatenate([top, bot], 0)

    def stack_heads(lin, vis):
        # Fuse the two (independent) projection heads into one lane-dense slab:
        # block-diagonal weights process [linguistic || visual] in one matmul
        # per layer; per-feature BatchNorm statistics are unchanged.  w1 also
        # absorbs the conv global-average-pool: its visual rows are duplicated
        # (one copy per packed conv half) and pre-scaled by 1/NPATCH.
        out = {}
        pad_l = jnp.zeros((TXT_DIM, HID), jnp.float32)
        pad_v = jnp.zeros((VIS_DIM, HID), jnp.float32)
        w1_lin = jnp.concatenate([lin['w1'], pad_l], axis=1)            # (Dt, 2H)
        w1_vis = jnp.concatenate([pad_v, vis['w1'] / NPATCH], axis=1)   # (Dv, 2H)
        out['w1'] = jnp.concatenate([w1_lin, w1_vis, w1_vis], axis=0)   # (Dt+2Dv, 2H)
        out['w2'] = block_diag(lin['w2'], vis['w2'])                    # (2H, 2H)
        out['w3'] = block_diag(lin['w3'], vis['w3'])                    # (2H, 2*OUT)
        for name in ('b1', 'g1', 'be1', 'b2', 'g2', 'be2', 'b3'):
            out[name] = jnp.concatenate([lin[name], vis[name]], axis=1)
        return out

    conv_w = nrm(ks[0], (KDIM, VIS_DIM))
    # 2x K-packed block-diagonal conv weight, stored bf16 (MXU operand dtype).
    conv_w_packed = block_diag(conv_w, conv_w).astype(jnp.bfloat16)     # (72, 64)

    lin_proj = proj_params(ks[3], TXT_DIM)
    vis_proj = proj_params(ks[4], VIS_DIM)

    return dict(
        tok_emb=nrm(ks[1], (VOCAB, TXT_DIM), 0.1),
        pool_w=nrm(ks[2], (TXT_DIM, TXT_DIM)),
        pool_b=jnp.zeros((1, TXT_DIM), jnp.float32),
        conv_w=conv_w_packed,
        conv_b=jnp.zeros((1, KPACK * VIS_DIM), jnp.float32),
        proj=stack_heads(lin_proj, vis_proj),
    )


def extract_patches(images_nchw):
    # (N, C, H, W) -> K-packed bf16 im2col slab (N*H*W/KPACK, KPACK*C*KH*KW).
    # bf16 here halves the only sizable HBM transfer and matches the MXU
    # operand dtype (conv still accumulates in f32 inside the kernel).
    patches = jax.lax.conv_general_dilated_patches(
        images_nchw, (KH, KW), (1, 1), 'SAME')        # (N, C*KH*KW, H, W)
    n = images_nchw.shape[0]
    flat = jnp.transpose(patches, (0, 2, 3, 1)).reshape(n * IMG_H * IMG_W, KDIM)
    return flat.reshape(n * IMG_H * IMG_W // KPACK,
                        KPACK * KDIM).astype(jnp.bfloat16)


def vicreg_forward(params, input_ids, attention_mask, images):
    # --- linguistic branch ---
    # TODO(synk): full transformer EncoderModel replaced by synthetic embedding
    # + masked mean pool; its pooler (dense + tanh) runs inside the fused kernel.
    emb = jnp.take(params['tok_emb'], input_ids, axis=0)          # (N, S, Dt)
    mask = attention_mask.astype(jnp.float32)
    pooled = jnp.sum(emb * mask[:, :, None], axis=1) / jnp.maximum(
        jnp.sum(mask, axis=1, keepdims=True), 1.0)                # (N, Dt)

    # --- visual branch im2col (conv + pool happen inside the kernel) ---
    patches_packed = extract_patches(images)                      # (N*P/2, 72)

    # --- single fused kernel: pooler + conv/pool + stacked proj MLP + loss ---
    linguistic, visual, loss = vicreg_fused(pooled, patches_packed, params)
    return {'loss': loss, 'linguistic': linguistic, 'visual': visual}


if __name__ == "__main__":
    key = jax.random.PRNGKey(0)
    kp, kid, kimg = jax.random.split(key, 3)
    params = init_params(kp)

    input_ids = jax.random.randint(kid, (BATCH, SEQ), 0, VOCAB)
    lengths = jnp.array([12, 10, 8, 12, 6, 9, 11, 7], jnp.int32)
    attention_mask = (jnp.arange(SEQ)[None, :] < lengths[:, None]).astype(jnp.int32)
    images = jax.random.normal(kimg, (BATCH, IMG_C, IMG_H, IMG_W), jnp.float32)

    fwd = jax.jit(vicreg_forward)
    out = fwd(params, input_ids, attention_mask, images)
    jax.block_until_ready(out)
    assert out['linguistic'].shape == (BATCH, OUT)
    assert out['visual'].shape == (BATCH, OUT)
    assert out['loss'].shape == ()
    assert bool(jnp.isfinite(out['loss']))
    print("KERNEL_OK")
</pallas_src>

<mosaic_0001>
module attributes {stable_mosaic.version = 11 : i64} {
  func.func @_vicreg_fused_kernel(%arg0: memref<8x32xf32, #tpu.memory_space<vmem>>, %arg1: memref<32x32xf32, #tpu.memory_space<vmem>>, %arg2: memref<1x32xf32, #tpu.memory_space<vmem>>, %arg3: memref<1024x72xbf16, #tpu.memory_space<any>>, %arg4: memref<72x64xbf16, #tpu.memory_space<vmem>>, %arg5: memref<1x64xf32, #tpu.memory_space<vmem>>, %arg6: memref<96x128xf32, #tpu.memory_space<vmem>>, %arg7: memref<1x128xf32, #tpu.memory_space<vmem>>, %arg8: memref<1x128xf32, #tpu.memory_space<vmem>>, %arg9: memref<1x128xf32, #tpu.memory_space<vmem>>, %arg10: memref<128x128xf32, #tpu.memory_space<vmem>>, %arg11: memref<1x128xf32, #tpu.memory_space<vmem>>, %arg12: memref<1x128xf32, #tpu.memory_space<vmem>>, %arg13: memref<1x128xf32, #tpu.memory_space<vmem>>, %arg14: memref<128x64xf32, #tpu.memory_space<vmem>>, %arg15: memref<1x64xf32, #tpu.memory_space<vmem>>, %arg16: memref<8x64xf32, #tpu.memory_space<vmem>>, %arg17: memref<1x1xf32, #tpu.memory_space<smem>>, %arg18: memref<1024x72xbf16, #tpu.memory_space<vmem>>, %arg19: memref<!tpu.dma_semaphore, #tpu.memory_space<semaphore_mem>>) attributes {dimension_semantics = [], scalar_prefetch = 0 : i64, scratch_operands = 2 : i64, tpu.core_type = #tpu.core_type<tc>} {
    tpu.enqueue_dma source(%arg3 : memref<1024x72xbf16, #tpu.memory_space<any>>) target(%arg18 : memref<1024x72xbf16, #tpu.memory_space<vmem>>) target_semaphore(%arg19 : memref<!tpu.dma_semaphore, #tpu.memory_space<semaphore_mem>>)
    %c0 = arith.constant 0 : index
    %c0_0 = arith.constant 0 : index
    %0 = vector.load %arg0[%c0, %c0_0] : memref<8x32xf32, #tpu.memory_space<vmem>>, vector<8x32xf32>
    %c0_1 = arith.constant 0 : index
    %c0_2 = arith.constant 0 : index
    %1 = vector.load %arg1[%c0_1, %c0_2] : memref<32x32xf32, #tpu.memory_space<vmem>>, vector<32x32xf32>
    %cst = arith.constant dense<0.000000e+00> : vector<8x32xf32>
    %2 = tpu.matmul %0, %1, %cst {dimension_numbers = #tpu.dot_dimension_numbers<[1], [0], [0], [1], [0, 0, 1, 1], [], []>} : vector<8x32xf32>, vector<32x32xf32>, vector<8x32xf32> -> vector<8x32xf32>
    %c0_3 = arith.constant 0 : index
    %c0_4 = arith.constant 0 : index
    %3 = vector.load %arg2[%c0_3, %c0_4] : memref<1x32xf32, #tpu.memory_space<vmem>>, vector<1x32xf32>
    %4 = vector.broadcast %3 : vector<1x32xf32> to vector<8x32xf32>
    %5 = arith.addf %2, %4 : vector<8x32xf32>
    %6 = math.tanh %5 : vector<8x32xf32>
    tpu.wait_dma2 semaphore(%arg19 : memref<!tpu.dma_semaphore, #tpu.memory_space<semaphore_mem>>) src(%arg3 : memref<1024x72xbf16, #tpu.memory_space<any>>) dst(%arg18 : memref<1024x72xbf16, #tpu.memory_space<vmem>>)
    %c0_5 = arith.constant 0 : index
    %c0_6 = arith.constant 0 : index
    %7 = vector.load %arg18[%c0_5, %c0_6] : memref<1024x72xbf16, #tpu.memory_space<vmem>>, vector<1024x72xbf16>
    %c0_7 = arith.constant 0 : index
    %c0_8 = arith.constant 0 : index
    %8 = vector.load %arg4[%c0_7, %c0_8] : memref<72x64xbf16, #tpu.memory_space<vmem>>, vector<72x64xbf16>
    %cst_9 = arith.constant dense<0.000000e+00> : vector<1024x64xf32>
    %9 = tpu.matmul %7, %8, %cst_9 {dimension_numbers = #tpu.dot_dimension_numbers<[1], [0], [0], [1], [0, 0, 1, 1], [], []>} : vector<1024x72xbf16>, vector<72x64xbf16>, vector<1024x64xf32> -> vector<1024x64xf32>
    %c0_10 = arith.constant 0 : index
    %c0_11 = arith.constant 0 : index
    %10 = vector.load %arg5[%c0_10, %c0_11] : memref<1x64xf32, #tpu.memory_space<vmem>>, vector<1x64xf32>
    %11 = vector.broadcast %10 : vector<1x64xf32> to vector<1024x64xf32>
    %12 = arith.addf %9, %11 : vector<1024x64xf32>
    %cst_12 = arith.constant 0.000000e+00 : f32
    %13 = vector.broadcast %cst_12 : f32 to vector<1024x64xf32>
    %14 = arith.maximumf %12, %13 : vector<1024x64xf32>
    %15 = vector.shape_cast %14 : vector<1024x64xf32> to vector<8x128x64xf32>
    %cst_13 = arith.constant dense<0.000000e+00> : vector<8x64xf32>
    %16 = vector.multi_reduction <add>, %15, %cst_13 [1] : vector<8x128x64xf32> to vector<8x64xf32>
    %17 = tpu.concatenate %6, %16 in 1 : vector<8x32xf32>, vector<8x64xf32> -> vector<8x96xf32>
    %c0_14 = arith.constant 0 : index
    %c0_15 = arith.constant 0 : index
    %18 = vector.load %arg6[%c0_14, %c0_15] : memref<96x128xf32, #tpu.memory_space<vmem>>, vector<96x128xf32>
    %cst_16 = arith.constant dense<0.000000e+00> : vector<8x128xf32>
    %19 = tpu.matmul %17, %18, %cst_16 {dimension_numbers = #tpu.dot_dimension_numbers<[1], [0], [0], [1], [0, 0, 1, 1], [], []>} : vector<8x96xf32>, vector<96x128xf32>, vector<8x128xf32> -> vector<8x128xf32>
    %c0_17 = arith.constant 0 : index
    %c0_18 = arith.constant 0 : index
    %20 = vector.load %arg7[%c0_17, %c0_18] : memref<1x128xf32, #tpu.memory_space<vmem>>, vector<1x128xf32>
    %21 = vector.broadcast %20 : vector<1x128xf32> to vector<8x128xf32>
    %22 = arith.addf %19, %21 : vector<8x128xf32>
    %c0_19 = arith.constant 0 : index
    %c0_20 = arith.constant 0 : index
    %23 = vector.load %arg8[%c0_19, %c0_20] : memref<1x128xf32, #tpu.memory_space<vmem>>, vector<1x128xf32>
    %c0_21 = arith.constant 0 : index
    %c0_22 = arith.constant 0 : index
    %24 = vector.load %arg9[%c0_21, %c0_22] : memref<1x128xf32, #tpu.memory_space<vmem>>, vector<1x128xf32>
    %cst_23 = arith.constant dense<0.000000e+00> : vector<128xf32>
    %25 = vector.multi_reduction <add>, %22, %cst_23 [0] : vector<8x128xf32> to vector<128xf32>
    %26 = vector.shape_cast %25 : vector<128xf32> to vector<1x128xf32>
    %cst_24 = arith.constant 8.000000e+00 : f32
    %27 = vector.broadcast %cst_24 : f32 to vector<1x128xf32>
    %28 = arith.divf %26, %27 : vector<1x128xf32>
    %29 = vector.broadcast %28 : vector<1x128xf32> to vector<8x128xf32>
    %30 = arith.subf %22, %29 : vector<8x128xf32>
    %31 = arith.mulf %30, %30 : vector<8x128xf32>
    %cst_25 = arith.constant dense<0.000000e+00> : vector<128xf32>
    %32 = vector.multi_reduction <add>, %31, %cst_25 [0] : vector<8x128xf32> to vector<128xf32>
    %33 = vector.shape_cast %32 : vector<128xf32> to vector<1x128xf32>
    %cst_26 = arith.constant 8.000000e+00 : f32
    %34 = vector.broadcast %cst_26 : f32 to vector<1x128xf32>
    %35 = arith.divf %33, %34 : vector<1x128xf32>
    %36 = vector.broadcast %28 : vector<1x128xf32> to vector<8x128xf32>
    %37 = arith.subf %22, %36 : vector<8x128xf32>
    %cst_27 = arith.constant 9.99999974E-6 : f32
    %38 = vector.broadcast %cst_27 : f32 to vector<1x128xf32>
    %39 = arith.addf %35, %38 : vector<1x128xf32>
    %40 = math.rsqrt %39 : vector<1x128xf32>
    %41 = vector.broadcast %40 : vector<1x128xf32> to vector<8x128xf32>
    %42 = arith.mulf %37, %41 : vector<8x128xf32>
    %43 = vector.broadcast %23 : vector<1x128xf32> to vector<8x128xf32>
    %44 = arith.mulf %42, %43 : vector<8x128xf32>
    %45 = vector.broadcast %24 : vector<1x128xf32> to vector<8x128xf32>
    %46 = arith.addf %44, %45 : vector<8x128xf32>
    %cst_28 = arith.constant 0.000000e+00 : f32
    %47 = vector.broadcast %cst_28 : f32 to vector<8x128xf32>
    %48 = arith.maximumf %46, %47 : vector<8x128xf32>
    %c0_29 = arith.constant 0 : index
    %c0_30 = arith.constant 0 : index
    %49 = vector.load %arg10[%c0_29, %c0_30] : memref<128x128xf32, #tpu.memory_space<vmem>>, vector<128x128xf32>
    %cst_31 = arith.constant dense<0.000000e+00> : vector<8x128xf32>
    %50 = tpu.matmul %48, %49, %cst_31 {dimension_numbers = #tpu.dot_dimension_numbers<[1], [0], [0], [1], [0, 0, 1, 1], [], []>} : vector<8x128xf32>, vector<128x128xf32>, vector<8x128xf32> -> vector<8x128xf32>
    %c0_32 = arith.constant 0 : index
    %c0_33 = arith.constant 0 : index
    %51 = vector.load %arg11[%c0_32, %c0_33] : memref<1x128xf32, #tpu.memory_space<vmem>>, vector<1x128xf32>
    %52 = vector.broadcast %51 : vector<1x128xf32> to vector<8x128xf32>
    %53 = arith.addf %50, %52 : vector<8x128xf32>
    %c0_34 = arith.constant 0 : index
    %c0_35 = arith.constant 0 : index
    %54 = vector.load %arg12[%c0_34, %c0_35] : memref<1x128xf32, #tpu.memory_space<vmem>>, vector<1x128xf32>
    %c0_36 = arith.constant 0 : index
    %c0_37 = arith.constant 0 : index
    %55 = vector.load %arg13[%c0_36, %c0_37] : memref<1x128xf32, #tpu.memory_space<vmem>>, vector<1x128xf32>
    %cst_38 = arith.constant dense<0.000000e+00> : vector<128xf32>
    %56 = vector.multi_reduction <add>, %53, %cst_38 [0] : vector<8x128xf32> to vector<128xf32>
    %57 = vector.shape_cast %56 : vector<128xf32> to vector<1x128xf32>
    %cst_39 = arith.constant 8.000000e+00 : f32
    %58 = vector.broadcast %cst_39 : f32 to vector<1x128xf32>
    %59 = arith.divf %57, %58 : vector<1x128xf32>
    %60 = vector.broadcast %59 : vector<1x128xf32> to vector<8x128xf32>
    %61 = arith.subf %53, %60 : vector<8x128xf32>
    %62 = arith.mulf %61, %61 : vector<8x128xf32>
    %cst_40 = arith.constant dense<0.000000e+00> : vector<128xf32>
    %63 = vector.multi_reduction <add>, %62, %cst_40 [0] : vector<8x128xf32> to vector<128xf32>
    %64 = vector.shape_cast %63 : vector<128xf32> to vector<1x128xf32>
    %cst_41 = arith.constant 8.000000e+00 : f32
    %65 = vector.broadcast %cst_41 : f32 to vector<1x128xf32>
    %66 = arith.divf %64, %65 : vector<1x128xf32>
    %67 = vector.broadcast %59 : vector<1x128xf32> to vector<8x128xf32>
    %68 = arith.subf %53, %67 : vector<8x128xf32>
    %cst_42 = arith.constant 9.99999974E-6 : f32
    %69 = vector.broadcast %cst_42 : f32 to vector<1x128xf32>
    %70 = arith.addf %66, %69 : vector<1x128xf32>
    %71 = math.rsqrt %70 : vector<1x128xf32>
    %72 = vector.broadcast %71 : vector<1x128xf32> to vector<8x128xf32>
    %73 = arith.mulf %68, %72 : vector<8x128xf32>
    %74 = vector.broadcast %54 : vector<1x128xf32> to vector<8x128xf32>
    %75 = arith.mulf %73, %74 : vector<8x128xf32>
    %76 = vector.broadcast %55 : vector<1x128xf32> to vector<8x128xf32>
    %77 = arith.addf %75, %76 : vector<8x128xf32>
    %cst_43 = arith.constant 0.000000e+00 : f32
    %78 = vector.broadcast %cst_43 : f32 to vector<8x128xf32>
    %79 = arith.maximumf %77, %78 : vector<8x128xf32>
    %c0_44 = arith.constant 0 : index
    %c0_45 = arith.constant 0 : index
    %80 = vector.load %arg14[%c0_44, %c0_45] : memref<128x64xf32, #tpu.memory_space<vmem>>, vector<128x64xf32>
    %cst_46 = arith.constant dense<0.000000e+00> : vector<8x64xf32>
    %81 = tpu.matmul %79, %80, %cst_46 {dimension_numbers = #tpu.dot_dimension_numbers<[1], [0], [0], [1], [0, 0, 1, 1], [], []>} : vector<8x128xf32>, vector<128x64xf32>, vector<8x64xf32> -> vector<8x64xf32>
    %c0_47 = arith.constant 0 : index
    %c0_48 = arith.constant 0 : index
    %82 = vector.load %arg15[%c0_47, %c0_48] : memref<1x64xf32, #tpu.memory_space<vmem>>, vector<1x64xf32>
    %83 = vector.broadcast %82 : vector<1x64xf32> to vector<8x64xf32>
    %84 = arith.addf %81, %83 : vector<8x64xf32>
    %c0_49 = arith.constant 0 : index
    %c0_50 = arith.constant 0 : index
    %85 = vector.load %arg16[%c0_49, %c0_50] : memref<8x64xf32, #tpu.memory_space<vmem>>, vector<8x64xf32>
    tpu.vector_store %arg16[%c0_49, %c0_50], %84 {strides = array<i32>} : memref<8x64xf32, #tpu.memory_space<vmem>>, vector<8x64xf32>,
    %86 = vector.extract_strided_slice %84 {offsets = [0, 0], sizes = [8, 32], strides = [1, 1]} : vector<8x64xf32> to vector<8x32xf32>
    %87 = vector.extract_strided_slice %84 {offsets = [0, 32], sizes = [8, 32], strides = [1, 1]} : vector<8x64xf32> to vector<8x32xf32>
    %88 = arith.subf %86, %87 : vector<8x32xf32>
    %89 = arith.mulf %88, %88 : vector<8x32xf32>
    %90 = vector.shape_cast %89 : vector<8x32xf32> to vector<1x8x32xf32>
    %cst_51 = arith.constant dense<0.000000e+00> : vector<1xf32>
    %91 = vector.multi_reduction <add>, %90, %cst_51 [1, 2] : vector<1x8x32xf32> to vector<1xf32>
    %92 = vector.shape_cast %91 : vector<1xf32> to vector<1x1x1xf32>
    %93 = vector.extract %92[0, 0, 0] : f32 from vector<1x1x1xf32>
    %cst_52 = arith.constant 2.560000e+02 : f32
    %94 = arith.divf %93, %cst_52 : f32
    %cst_53 = arith.constant dense<0.000000e+00> : vector<64xf32>
    %95 = vector.multi_reduction <add>, %84, %cst_53 [0] : vector<8x64xf32> to vector<64xf32>
    %96 = vector.shape_cast %95 : vector<64xf32> to vector<1x64xf32>
    %cst_54 = arith.constant 8.000000e+00 : f32
    %97 = vector.broadcast %cst_54 : f32 to vector<1x64xf32>
    %98 = arith.divf %96, %97 : vector<1x64xf32>
    %99 = vector.broadcast %98 : vector<1x64xf32> to vector<8x64xf32>
    %100 = arith.subf %84, %99 : vector<8x64xf32>
    %101 = arith.mulf %100, %100 : vector<8x64xf32>
    %cst_55 = arith.constant dense<0.000000e+00> : vector<64xf32>
    %102 = vector.multi_reduction <add>, %101, %cst_55 [0] : vector<8x64xf32> to vector<64xf32>
    %103 = vector.shape_cast %102 : vector<64xf32> to vector<1x64xf32>
    %cst_56 = arith.constant 7.000000e+00 : f32
    %104 = vector.broadcast %cst_56 : f32 to vector<1x64xf32>
    %105 = arith.divf %103, %104 : vector<1x64xf32>
    %cst_57 = arith.constant 9.99999974E-5 : f32
    %106 = vector.broadcast %cst_57 : f32 to vector<1x64xf32>
    %107 = arith.addf %105, %106 : vector<1x64xf32>
    %108 = math.sqrt %107 : vector<1x64xf32>
    %cst_58 = arith.constant 1.000000e+00 : f32
    %109 = vector.broadcast %cst_58 : f32 to vector<1x64xf32>
    %110 = arith.subf %109, %108 : vector<1x64xf32>
    %cst_59 = arith.constant 0.000000e+00 : f32
    %111 = vector.broadcast %cst_59 : f32 to vector<1x64xf32>
    %112 = arith.maximumf %110, %111 : vector<1x64xf32>
    %113 = vector.shape_cast %112 : vector<1x64xf32> to vector<1x1x64xf32>
    %cst_60 = arith.constant dense<0.000000e+00> : vector<1xf32>
    %114 = vector.multi_reduction <add>, %113, %cst_60 [1, 2] : vector<1x1x64xf32> to vector<1xf32>
    %115 = vector.shape_cast %114 : vector<1xf32> to vector<1x1x1xf32>
    %116 = vector.extract %115[0, 0, 0] : f32 from vector<1x1x1xf32>
    %cst_61 = arith.constant 6.400000e+01 : f32
    %117 = arith.divf %116, %cst_61 : f32
    %cst_62 = arith.constant dense<0.000000e+00> : vector<64x64xf32>
    %118 = tpu.matmul %100, %100, %cst_62 {dimension_numbers = #tpu.dot_dimension_numbers<[0], [0], [1], [1], [0, 1, 1, 1], [], []>} : vector<8x64xf32>, vector<8x64xf32>, vector<64x64xf32> -> vector<64x64xf32>
    %cst_63 = arith.constant 7.000000e+00 : f32
    %119 = vector.broadcast %cst_63 : f32 to vector<64x64xf32>
    %120 = arith.divf %118, %119 : vector<64x64xf32>
    %121 = tpu.iota {dimensions = array<i32: 0>} : vector<64x64xi32>
    %122 = tpu.iota {dimensions = array<i32: 1>} : vector<64x64xi32>
    %c32_i32 = arith.constant 32 : i32
    %123 = vector.broadcast %c32_i32 : i32 to vector<64x64xi32>
    %124 = arith.cmpi slt, %121, %123 : vector<64x64xi32>
    %c32_i32_64 = arith.constant 32 : i32
    %125 = vector.broadcast %c32_i32_64 : i32 to vector<64x64xi32>
    %126 = arith.cmpi slt, %122, %125 : vector<64x64xi32>
    %127 = arith.xori %124, %126 : vector<64x64xi1>
    %cst_65 = arith.constant dense<true> : vector<64x64xi1>
    %128 = arith.xori %127, %cst_65 : vector<64x64xi1>
    %129 = arith.mulf %120, %120 : vector<64x64xf32>
    %cst_66 = arith.constant 0.000000e+00 : f32
    %130 = vector.broadcast %cst_66 : f32 to vector<64x64xf32>
    %131 = arith.select %128, %129, %130 : vector<64x64xi1>, vector<64x64xf32>
    %132 = vector.shape_cast %131 : vector<64x64xf32> to vector<1x64x64xf32>
    %cst_67 = arith.constant dense<0.000000e+00> : vector<1xf32>
    %133 = vector.multi_reduction <add>, %132, %cst_67 [1, 2] : vector<1x64x64xf32> to vector<1xf32>
    %134 = vector.shape_cast %133 : vector<1xf32> to vector<1x1x1xf32>
    %135 = vector.extract %134[0, 0, 0] : f32 from vector<1x1x1xf32>
    %136 = arith.mulf %105, %105 : vector<1x64xf32>
    %137 = vector.shape_cast %136 : vector<1x64xf32> to vector<1x1x64xf32>
    %cst_68 = arith.constant dense<0.000000e+00> : vector<1xf32>
    %138 = vector.multi_reduction <add>, %137, %cst_68 [1, 2] : vector<1x1x64xf32> to vector<1xf32>
    %139 = vector.shape_cast %138 : vector<1xf32> to vector<1x1x1xf32>
    %140 = vector.extract %139[0, 0, 0] : f32 from vector<1x1x1xf32>
    %141 = arith.subf %135, %140 : f32
    %cst_69 = arith.constant 3.200000e+01 : f32
    %142 = arith.divf %141, %cst_69 : f32
    %cst_70 = arith.constant 2.500000e+01 : f32
    %143 = arith.mulf %cst_70, %94 : f32
    %cst_71 = arith.constant 2.500000e+01 : f32
    %144 = arith.mulf %cst_71, %117 : f32
    %145 = arith.addf %143, %144 : f32
    %cst_72 = arith.constant 1.000000e+00 : f32
    %146 = arith.mulf %cst_72, %142 : f32
    %147 = arith.addf %145, %146 : f32
    %c0_73 = arith.constant 0 : index
    %c0_74 = arith.constant 0 : index
    %148 = memref.load %arg17[%c0_73, %c0_74] : memref<1x1xf32, #tpu.memory_space<smem>>
    memref.store %147, %arg17[%c0_73, %c0_74] : memref<1x1xf32, #tpu.memory_space<smem>>
    return
  }
}

</mosaic_0001>

<llo_original>
// kernel: vicreg_forward.1
$region0: #{vicreg_forward.1}
  #allocation0 [shape = 'u32[]', space=smem, size = 0x4, offset = 0x4, fixed_abs, tag = 'smem constant byte address 0x4 - core index']
  #allocation1 [shape = 'u32[144,128]{1,0:T(1,128)}', space=vmem, size = 0x12000, scoped, tag = 'internal scratch']
  #allocation2 [shape = 'bf16[1024,72]{1,0:T(16,128)(2,1)}', space=vmem, size = 0x40000, scoped, tag = 'scratch operand']
  #allocation3 [shape = 's32[1]{0}', space=sflag, size = 0x4, scoped, tag = 'scratch operand']
  #allocation6 [shape = 's32[]', space=sflag, size = 0x4, offset = 0, fixed_abs, tag = 'sflag constant byte address 0x0 - dummy sync flag']
  %s0 = inlined_call_operand.vmem [shape: f32[8,32], index: 0, kind: input, shape index: {}]
  %s1 = inlined_call_operand.vmem [shape: f32[32,32], index: 1, kind: input, shape index: {}]
  %s2 = inlined_call_operand.vmem [shape: f32[1,32], index: 2, kind: input, shape index: {}]
  %s3 = inlined_call_operand.vmem [shape: bf16[1024,72], index: 3, kind: input, shape index: {}]
  %s4 = inlined_call_operand.vmem [shape: bf16[72,64], index: 4, kind: input, shape index: {}]
  %s5 = inlined_call_operand.vmem [shape: f32[1,64], index: 5, kind: input, shape index: {}]
  %s6 = inlined_call_operand.vmem [shape: f32[96,128], index: 6, kind: input, shape index: {}]
  %s7 = inlined_call_operand.vmem [shape: f32[1,128], index: 7, kind: input, shape index: {}]
  %s8 = inlined_call_operand.vmem [shape: f32[1,128], index: 8, kind: input, shape index: {}]
  %s9 = inlined_call_operand.vmem [shape: f32[1,128], index: 9, kind: input, shape index: {}]
  %s10 = inlined_call_operand.vmem [shape: f32[128,128], index: 10, kind: input, shape index: {}]
  %s11 = inlined_call_operand.vmem [shape: f32[1,128], index: 11, kind: input, shape index: {}]
  %s12 = inlined_call_operand.vmem [shape: f32[1,128], index: 12, kind: input, shape index: {}]
  %s13 = inlined_call_operand.vmem [shape: f32[1,128], index: 13, kind: input, shape index: {}]
  %s14 = inlined_call_operand.vmem [shape: f32[128,64], index: 14, kind: input, shape index: {}]
  %s15 = inlined_call_operand.vmem [shape: f32[1,64], index: 15, kind: input, shape index: {}]
  %s16 = inlined_call_operand.vmem [shape: f32[8,64], index: 16, kind: output, shape index: {0}]
  %s17 = inlined_call_operand.hbm [shape: f32[1,1], index: 17, kind: output, shape index: {1}]
  %18 = xla_tuple %s16, %s17
  %s19 = sld [smem:[#allocation0]]
  $region112: #{vicreg_forward.1} parent=0
    _
  %s21 = ssub.s32 1, %s19
  %s22 = scalar_select 0, %s21, %s19
  $region1: #{vicreg_forward.1} parent=0
    #allocation4 [shape = 'u8[512]{0}', space=smem, size = 0x200, scoped, tag = 'output window, operand 1, single buffered']
    #allocation5 [shape = 's32[1]{0}', space=sflag, size = 0x4, scoped, tag = 'scoped memory for vicreg_forward.1']
    %23 = vsyncpa [#allocation5], 0
    // Predicated region
    $region2: #{vicreg_forward.1} parent=1 // pred_check
      _
    $region3: #{vicreg_forward.1} parent=1 // pred_check_branch
      %25 = sbr.rel (0) target = $region5
    $region4: #{vicreg_forward.1} parent=1 // pred_region
      _
    $region5: #{vicreg_forward.1} parent=1 // pred_fallthru
      _
    // Predicated region
    $region6: #{vicreg_forward.1} parent=1 // pred_check
      _
    $region7: #{vicreg_forward.1} parent=1 // pred_check_branch
      %27 = sbr.rel (0) target = $region9
    $region8: #{vicreg_forward.1} parent=1 // pred_region
      _
    $region9: #{vicreg_forward.1} parent=1 // pred_fallthru
      _
    // Predicated region
    $region10: #{vicreg_forward.1} parent=1 // pred_check
      _
    $region11: #{vicreg_forward.1} parent=1 // pred_check_branch
      %29 = sbr.rel (0) target = $region13
    $region12: #{vicreg_forward.1} parent=1 // pred_region
      _
    $region13: #{vicreg_forward.1} parent=1 // pred_fallthru
      _
    // Predicated region
    $region14: #{vicreg_forward.1} parent=1 // pred_check
      _
    $region15: #{vicreg_forward.1} parent=1 // pred_check_branch
      %31 = sbr.rel (0) target = $region17
    $region16: #{vicreg_forward.1} parent=1 // pred_region
      _
    $region17: #{vicreg_forward.1} parent=1 // pred_fallthru
      _
    // Predicated region
    $region18: #{vicreg_forward.1} parent=1 // pred_check
      _
    $region19: #{vicreg_forward.1} parent=1 // pred_check_branch
      %33 = sbr.rel (0) target = $region21
    $region20: #{vicreg_forward.1} parent=1 // pred_region
      _
    $region21: #{vicreg_forward.1} parent=1 // pred_fallthru
      _
    // Predicated region
    $region22: #{vicreg_forward.1} parent=1 // pred_check
      _
    $region23: #{vicreg_forward.1} parent=1 // pred_check_branch
      %35 = sbr.rel (0) target = $region25
    $region24: #{vicreg_forward.1} parent=1 // pred_region
      _
    $region25: #{vicreg_forward.1} parent=1 // pred_fallthru
      _
    // Predicated region
    $region26: #{vicreg_forward.1} parent=1 // pred_check
      _
    $region27: #{vicreg_forward.1} parent=1 // pred_check_branch
      %37 = sbr.rel (0) target = $region29
    $region28: #{vicreg_forward.1} parent=1 // pred_region
      _
    $region29: #{vicreg_forward.1} parent=1 // pred_fallthru
      _
    // Predicated region
    $region30: #{vicreg_forward.1} parent=1 // pred_check
      _
    $region31: #{vicreg_forward.1} parent=1 // pred_check_branch
      %39 = sbr.rel (0) target = $region33
    $region32: #{vicreg_forward.1} parent=1 // pred_region
      _
    $region33: #{vicreg_forward.1} parent=1 // pred_fallthru
      _
    // Predicated region
    $region34: #{vicreg_forward.1} parent=1 // pred_check
      _
    $region35: #{vicreg_forward.1} parent=1 // pred_check_branch
      %41 = sbr.rel (0) target = $region37
    $region36: #{vicreg_forward.1} parent=1 // pred_region
      _
    $region37: #{vicreg_forward.1} parent=1 // pred_fallthru
      _
    // Predicated region
    $region38: #{vicreg_forward.1} parent=1 // pred_check
      _
    $region39: #{vicreg_forward.1} parent=1 // pred_check_branch
      %43 = sbr.rel (0) target = $region41
    $region40: #{vicreg_forward.1} parent=1 // pred_region
      _
    $region41: #{vicreg_forward.1} parent=1 // pred_fallthru
      _
    // Predicated region
    $region42: #{vicreg_forward.1} parent=1 // pred_check
      _
    $region43: #{vicreg_forward.1} parent=1 // pred_check_branch
      %45 = sbr.rel (0) target = $region45
    $region44: #{vicreg_forward.1} parent=1 // pred_region
      _
    $region45: #{vicreg_forward.1} parent=1 // pred_fallthru
      _
    // Predicated region
    $region46: #{vicreg_forward.1} parent=1 // pred_check
      _
    $region47: #{vicreg_forward.1} parent=1 // pred_check_branch
      %47 = sbr.rel (0) target = $region49
    $region48: #{vicreg_forward.1} parent=1 // pred_region
      _
    $region49: #{vicreg_forward.1} parent=1 // pred_fallthru
      _
    // Predicated region
    $region50: #{vicreg_forward.1} parent=1 // pred_check
      _
    $region51: #{vicreg_forward.1} parent=1 // pred_check_branch
      %49 = sbr.rel (0) target = $region53
    $region52: #{vicreg_forward.1} parent=1 // pred_region
      _
    $region53: #{vicreg_forward.1} parent=1 // pred_fallthru
      _
    // Predicated region
    $region54: #{vicreg_forward.1} parent=1 // pred_check
      _
    $region55: #{vicreg_forward.1} parent=1 // pred_check_branch
      %51 = sbr.rel (0) target = $region57
    $region56: #{vicreg_forward.1} parent=1 // pred_region
      _
    $region57: #{vicreg_forward.1} parent=1 // pred_fallthru
      _
    // Predicated region
    $region58: #{vicreg_forward.1} parent=1 // pred_check
      _
    $region59: #{vicreg_forward.1} parent=1 // pred_check_branch
      %53 = sbr.rel (0) target = $region61
    $region60: #{vicreg_forward.1} parent=1 // pred_region
      _
    $region61: #{vicreg_forward.1} parent=1 // pred_fallthru
      _
    %p56 = scmp.lt.u32.totalorder 512, 8
    %p57 = pneg %p56
    // Predicated region
    $region62: #{vicreg_forward.1} parent=1 // pred_check
      _
    $region63: #{vicreg_forward.1} parent=1 // pred_check_branch
      %59 = sbr.rel (%p56) target = $region65
    $region64: #{vicreg_forward.1} parent=1 // pred_region
      %s74 = sand.u32 512, 7
      %p75 = scmp.eq.s32.totalorder %s74, 0
      // Predicated region
      $region77: #{vicreg_forward.1} parent=64 // pred_check
        %p76 = pneg %p75
      $region78: #{vicreg_forward.1} parent=64 // pred_check_branch
        %78 = sbr.rel (%p76) target = $region80
      $region79: #{vicreg_forward.1} parent=64 // pred_region
        loop: start=0, step=1, limit=1
        $region81: #{vicreg_forward.1} parent=79 // loop_pre_header
          _
        $region82: #{vicreg_forward.1} parent=79 // loop_header
          %s80 = sphi 0, %s84
          %p81 = scmp.ge.s32.totalorder %s80, 1
          %s85 = sphi %s3, %s3
          %s86 = sphi [#allocation2], [#allocation2]
        $region83: #{vicreg_forward.1} parent=79 // loop_header_branch
          %83 = sbr.rel (%p81) target = $region87
        $region84: #{vicreg_forward.1} parent=79 // loop_body
          %v87 = vld [vmem:[%s85] sm:$0xff]
          %88 = vst [vmem:[%s86] sm:$0xff] %v87
          %v89 = vld [vmem:[%s85 + $0x8] sm:$0xff]
          %90 = vst [vmem:[%s86 + $0x8] sm:$0xff] %v89
          %v91 = vld [vmem:[%s85 + $0x10] sm:$0xff]
          %92 = vst [vmem:[%s86 + $0x10] sm:$0xff] %v91
          %v93 = vld [vmem:[%s85 + $0x18] sm:$0xff]
          %94 = vst [vmem:[%s86 + $0x18] sm:$0xff] %v93
          %v95 = vld [vmem:[%s85 + $0x20] sm:$0xff]
          %96 = vst [vmem:[%s86 + $0x20] sm:$0xff] %v95
          %v97 = vld [vmem:[%s85 + $0x28] sm:$0xff]
          %98 = vst [vmem:[%s86 + $0x28] sm:$0xff] %v97
          %v99 = vld [vmem:[%s85 + $0x30] sm:$0xff]
          %100 = vst [vmem:[%s86 + $0x30] sm:$0xff] %v99
          %v101 = vld [vmem:[%s85 + $0x38] sm:$0xff]
          %102 = vst [vmem:[%s86 + $0x38] sm:$0xff] %v101
          %v103 = vld [vmem:[%s85 + $0x40] sm:$0xff]
          %104 = vst [vmem:[%s86 + $0x40] sm:$0xff] %v103
          %v105 = vld [vmem:[%s85 + $0x48] sm:$0xff]
          %106 = vst [vmem:[%s86 + $0x48] sm:$0xff] %v105
          %v107 = vld [vmem:[%s85 + $0x50] sm:$0xff]
          %108 = vst [vmem:[%s86 + $0x50] sm:$0xff] %v107
          %v109 = vld [vmem:[%s85 + $0x58] sm:$0xff]
          %110 = vst [vmem:[%s86 + $0x58] sm:$0xff] %v109
          %v111 = vld [vmem:[%s85 + $0x60] sm:$0xff]
          %112 = vst [vmem:[%s86 + $0x60] sm:$0xff] %v111
          %v113 = vld [vmem:[%s85 + $0x68] sm:$0xff]
          %114 = vst [vmem:[%s86 + $0x68] sm:$0xff] %v113
          %v115 = vld [vmem:[%s85 + $0x70] sm:$0xff]
          %116 = vst [vmem:[%s86 + $0x70] sm:$0xff] %v115
          %v117 = vld [vmem:[%s85 + $0x78] sm:$0xff]
          %118 = vst [vmem:[%s86 + $0x78] sm:$0xff] %v117
          %v119 = vld [vmem:[%s85 + $0x80] sm:$0xff]
          %120 = vst [vmem:[%s86 + $0x80] sm:$0xff] %v119
          %v121 = vld [vmem:[%s85 + $0x88] sm:$0xff]
          %122 = vst [vmem:[%s86 + $0x88] sm:$0xff] %v121
          %v123 = vld [vmem:[%s85 + $0x90] sm:$0xff]
          %124 = vst [vmem:[%s86 + $0x90] sm:$0xff] %v123
          %v125 = vld [vmem:[%s85 + $0x98] sm:$0xff]
          %126 = vst [vmem:[%s86 + $0x98] sm:$0xff] %v125
          %v127 = vld [vmem:[%s85 + $0xa0] sm:$0xff]
          %128 = vst [vmem:[%s86 + $0xa0] sm:$0xff] %v127
          %v129 = vld [vmem:[%s85 + $0xa8] sm:$0xff]
          %130 = vst [vmem:[%s86 + $0xa8] sm:$0xff] %v129
          %v131 = vld [vmem:[%s85 + $0xb0] sm:$0xff]
          %132 = vst [vmem:[%s86 + $0xb0] sm:$0xff] %v131
          %v133 = vld [vmem:[%s85 + $0xb8] sm:$0xff]
          %134 = vst [vmem:[%s86 + $0xb8] sm:$0xff] %v133
          %v135 = vld [vmem:[%s85 + $0xc0] sm:$0xff]
          %136 = vst [vmem:[%s86 + $0xc0] sm:$0xff] %v135
          %v137 = vld [vmem:[%s85 + $0xc8] sm:$0xff]
          %138 = vst [vmem:[%s86 + $0xc8] sm:$0xff] %v137
          %v139 = vld [vmem:[%s85 + $0xd0] sm:$0xff]
          %140 = vst [vmem:[%s86 + $0xd0] sm:$0xff] %v139
          %v141 = vld [vmem:[%s85 + $0xd8] sm:$0xff]
          %142 = vst [vmem:[%s86 + $0xd8] sm:$0xff] %v141
          %v143 = vld [vmem:[%s85 + $0xe0] sm:$0xff]
          %144 = vst [vmem:[%s86 + $0xe0] sm:$0xff] %v143
          %v145 = vld [vmem:[%s85 + $0xe8] sm:$0xff]
          %146 = vst [vmem:[%s86 + $0xe8] sm:$0xff] %v145
          %v147 = vld [vmem:[%s85 + $0xf0] sm:$0xff]
          %148 = vst [vmem:[%s86 + $0xf0] sm:$0xff] %v147
          %v149 = vld [vmem:[%s85 + $0xf8] sm:$0xff]
          %150 = vst [vmem:[%s86 + $0xf8] sm:$0xff] %v149
          %v151 = vld [vmem:[%s85 + $0x100] sm:$0xff]
          %152 = vst [vmem:[%s86 + $0x100] sm:$0xff] %v151
          %v153 = vld [vmem:[%s85 + $0x108] sm:$0xff]
          %154 = vst [vmem:[%s86 + $0x108] sm:$0xff] %v153
          %v155 = vld [vmem:[%s85 + $0x110] sm:$0xff]
          %156 = vst [vmem:[%s86 + $0x110] sm:$0xff] %v155
          %v157 = vld [vmem:[%s85 + $0x118] sm:$0xff]
          %158 = vst [vmem:[%s86 + $0x118] sm:$0xff] %v157
          %v159 = vld [vmem:[%s85 + $0x120] sm:$0xff]
          %160 = vst [vmem:[%s86 + $0x120] sm:$0xff] %v159
          %v161 = vld [vmem:[%s85 + $0x128] sm:$0xff]
          %162 = vst [vmem:[%s86 + $0x128] sm:$0xff] %v161
          %v163 = vld [vmem:[%s85 + $0x130] sm:$0xff]
          %164 = vst [vmem:[%s86 + $0x130] sm:$0xff] %v163
          %v165 = vld [vmem:[%s85 + $0x138] sm:$0xff]
          %166 = vst [vmem:[%s86 + $0x138] sm:$0xff] %v165
          %v167 = vld [vmem:[%s85 + $0x140] sm:$0xff]
          %168 = vst [vmem:[%s86 + $0x140] sm:$0xff] %v167
          %v169 = vld [vmem:[%s85 + $0x148] sm:$0xff]
          %170 = vst [vmem:[%s86 + $0x148] sm:$0xff] %v169
          %v171 = vld [vmem:[%s85 + $0x150] sm:$0xff]
          %172 = vst [vmem:[%s86 + $0x150] sm:$0xff] %v171
          %v173 = vld [vmem:[%s85 + $0x158] sm:$0xff]
          %174 = vst [vmem:[%s86 + $0x158] sm:$0xff] %v173
          %v175 = vld [vmem:[%s85 + $0x160] sm:$0xff]
          %176 = vst [vmem:[%s86 + $0x160] sm:$0xff] %v175
          %v177 = vld [vmem:[%s85 + $0x168] sm:$0xff]
          %178 = vst [vmem:[%s86 + $0x168] sm:$0xff] %v177
          %v179 = vld [vmem:[%s85 + $0x170] sm:$0xff]
          %180 = vst [vmem:[%s86 + $0x170] sm:$0xff] %v179
          %v181 = vld [vmem:[%s85 + $0x178] sm:$0xff]
          %182 = vst [vmem:[%s86 + $0x178] sm:$0xff] %v181
          %v183 = vld [vmem:[%s85 + $0x180] sm:$0xff]
          %184 = vst [vmem:[%s86 + $0x180] sm:$0xff] %v183
          %v185 = vld [vmem:[%s85 + $0x188] sm:$0xff]
          %186 = vst [vmem:[%s86 + $0x188] sm:$0xff] %v185
          %v187 = vld [vmem:[%s85 + $0x190] sm:$0xff]
          %188 = vst [vmem:[%s86 + $0x190] sm:$0xff] %v187
          %v189 = vld [vmem:[%s85 + $0x198] sm:$0xff]
          %190 = vst [vmem:[%s86 + $0x198] sm:$0xff] %v189
          %v191 = vld [vmem:[%s85 + $0x1a0] sm:$0xff]
          %192 = vst [vmem:[%s86 + $0x1a0] sm:$0xff] %v191
          %v193 = vld [vmem:[%s85 + $0x1a8] sm:$0xff]
          %194 = vst [vmem:[%s86 + $0x1a8] sm:$0xff] %v193
          %v195 = vld [vmem:[%s85 + $0x1b0] sm:$0xff]
          %196 = vst [vmem:[%s86 + $0x1b0] sm:$0xff] %v195
          %v197 = vld [vmem:[%s85 + $0x1b8] sm:$0xff]
          %198 = vst [vmem:[%s86 + $0x1b8] sm:$0xff] %v197
          %v199 = vld [vmem:[%s85 + $0x1c0] sm:$0xff]
          %200 = vst [vmem:[%s86 + $0x1c0] sm:$0xff] %v199
          %v201 = vld [vmem:[%s85 + $0x1c8] sm:$0xff]
          %202 = vst [vmem:[%s86 + $0x1c8] sm:$0xff] %v201
          %v203 = vld [vmem:[%s85 + $0x1d0] sm:$0xff]
          %204 = vst [vmem:[%s86 + $0x1d0] sm:$0xff] %v203
          %v205 = vld [vmem:[%s85 + $0x1d8] sm:$0xff]
          %206 = vst [vmem:[%s86 + $0x1d8] sm:$0xff] %v205
          %v207 = vld [vmem:[%s85 + $0x1e0] sm:$0xff]
          %208 = vst [vmem:[%s86 + $0x1e0] sm:$0xff] %v207
          %v209 = vld [vmem:[%s85 + $0x1e8] sm:$0xff]
          %210 = vst [vmem:[%s86 + $0x1e8] sm:$0xff] %v209
          %v211 = vld [vmem:[%s85 + $0x1f0] sm:$0xff]
          %212 = vst [vmem:[%s86 + $0x1f0] sm:$0xff] %v211
          %v213 = vld [vmem:[%s85 + $0x1f8] sm:$0xff]
          %214 = vst [vmem:[%s86 + $0x1f8] sm:$0xff] %v213
        $region85: #{vicreg_forward.1} parent=79 // loop_footer
          %s84 = sadd.s32 1, %s80
        $region86: #{vicreg_forward.1} parent=79 // loop_footer_branch
          %79 = sbr.rel target = $region82
        $region87: #{vicreg_forward.1} parent=79 // loop_exit
          _
      $region80: #{vicreg_forward.1} parent=64 // pred_fallthru
        _
      %p215 = pneg %p75
      // Predicated region
      $region88: #{vicreg_forward.1} parent=64 // pred_check
        _
      $region89: #{vicreg_forward.1} parent=64 // pred_check_branch
        %217 = sbr.rel (%p75) target = $region91
      $region90: #{vicreg_forward.1} parent=64 // pred_region
        %s218 = sand.u32 512, 7
      $region91: #{vicreg_forward.1} parent=64 // pred_fallthru
        _
    $region65: #{vicreg_forward.1} parent=1 // pred_fallthru
      _
    // Predicated region
    $region66: #{vicreg_forward.1} parent=1 // pred_check
      %p60 = pneg %p56
    $region67: #{vicreg_forward.1} parent=1 // pred_check_branch
      %62 = sbr.rel (%p60) target = $region69
    $region68: #{vicreg_forward.1} parent=1 // pred_region
      %s63 = sshllo.u32 0, 512
      loop: start=0, step=1, limit=1
      $region70: #{vicreg_forward.1} parent=68 // loop_pre_header
        _
      $region71: #{vicreg_forward.1} parent=68 // loop_header
        %s65 = sphi 0, %s69
        %p66 = scmp.ge.s32.totalorder %s65, 1
        %s70 = sphi %s3, %s3
        %s71 = sphi [#allocation2], [#allocation2]
      $region72: #{vicreg_forward.1} parent=68 // loop_header_branch
        %68 = sbr.rel (%p66) target = $region76
      $region73: #{vicreg_forward.1} parent=68 // loop_body
        %v72 = vld [vmem:[%s70] sm:%s63]
        %73 = vst [vmem:[%s71] sm:%s63] %v72
      $region74: #{vicreg_forward.1} parent=68 // loop_footer
        %s69 = sadd.s32 1, %s65
      $region75: #{vicreg_forward.1} parent=68 // loop_footer_branch
        %64 = sbr.rel target = $region71
      $region76: #{vicreg_forward.1} parent=68 // loop_exit
        _
    $region69: #{vicreg_forward.1} parent=1 // pred_fallthru
      _
    // Predicated region
    $region92: #{vicreg_forward.1} parent=1 // pred_check
      _
    $region93: #{vicreg_forward.1} parent=1 // pred_check_branch
      %221 = sbr.rel (0) target = $region95
    $region94: #{vicreg_forward.1} parent=1 // pred_region
      %222 = vsyncadd [#allocation3], 8192
    $region95: #{vicreg_forward.1} parent=1 // pred_fallthru
      _
    %v223 = vld [vmem:[%s0] sm:$0xff]
    %v224 = vld [vmem:[%s1] sm:$0xff]
    %v225 = vld [vmem:[%s1 + $0x8] sm:$0xff]
    %v226 = vld [vmem:[%s1 + $0x10] sm:$0xff]
    %v227 = vld [vmem:[%s1 + $0x18] sm:$0xff]
    %v228 = vld [vmem:[%s2] sm:$0x1]
    %v230 = vlaneseq
    %v231 = vshrl.u32 %v230, 7
    %v232 = vsub.s32 0, %v231
    %v233 = vrot.slane %v228, %v232
    %vm235 = vcmask 261120
    %v237 = vsel %vm235, %v223, 0
    %239 = vmatprep.subr.mxu0 0.0
    %240 = vmatpush1.msra.mxu0 %v224
    %241 = vmatprep.subr.mxu0 0.0
    %242 = vmatpush1.msra.mxu0 %v225
    %243 = vmatprep.subr.mxu0 0.0
    %244 = vmatpush1.msra.mxu0 %v226
    %245 = vmatprep.subr.mxu0 0.0
    %246 = vmatpush1.msra.mxu0 %v227
    %247 = vmatprep.subr.mxu0 0.0
    %248 = vmatpush1.msra.mxu0 0.0
    %249 = vmatprep.subr.mxu0 0.0
    %250 = vmatpush1.msra.mxu0 0.0
    %251 = vmatprep.subr.mxu0 0.0
    %252 = vmatpush1.msra.mxu0 0.0
    %253 = vmatprep.subr.mxu0 0.0
    %254 = vmatpush1.msra.mxu0 0.0
    %255 = vmatprep.subr.mxu0 0.0
    %256 = vmatpush1.msra.mxu0 0.0
    %257 = vmatprep.subr.mxu0 0.0
    %258 = vmatpush1.msra.mxu0 0.0
    %259 = vmatprep.subr.mxu0 0.0
    %260 = vmatpush1.msra.mxu0 0.0
    %261 = vmatprep.subr.mxu0 0.0
    %262 = vmatpush1.msra.mxu0 0.0
    %263 = vmatprep.subr.mxu0 0.0
    %264 = vmatpush1.msra.mxu0 0.0
    %265 = vmatprep.subr.mxu0 0.0
    %266 = vmatpush1.msra.mxu0 0.0
    %267 = vmatprep.subr.mxu0 0.0
    %268 = vmatpush1.msra.mxu0 0.0
    %269 = vmatprep.subr.mxu0 0.0
    %270 = vmatpush1.msra.mxu0 0.0
    %271 = vmatprep.subr.mxu0 0.0
    %272 = vmatpush1.msra.mxu0 0.0
    %273 = vmatprep.subr.mxu0 0.0
    %274 = vmatpush1.msra.mxu0 0.0
    %275 = vmatprep.subr.mxu0 0.0
    %276 = vmatpush1.msra.mxu0 0.0
    %277 = vmatprep.subr.mxu0 0.0
    %278 = vmatpush1.msra.mxu0 0.0
    %279 = vmatprep.subr.mxu0 0.0
    %280 = vmatpush1.msra.mxu0 0.0
    %281 = vmatprep.subr.mxu0 0.0
    %282 = vmatpush1.msra.mxu0 0.0
    %283 = vmatprep.subr.mxu0 0.0
    %284 = vmatpush1.msra.mxu0 0.0
    %285 = vmatprep.subr.mxu0 0.0
    %286 = vmatpush1.msra.mxu0 0.0
    %287 = vmatprep.subr.mxu0 0.0
    %288 = vmatpush1.msra.mxu0 0.0
    %289 = vmatprep.subr.mxu0 0.0
    %290 = vmatpush1.msra.mxu0 0.0
    %291 = vmatprep.subr.mxu0 0.0
    %292 = vmatpush1.msra.mxu0 0.0
    %293 = vmatprep.subr.mxu0 0.0
    %294 = vmatpush1.msra.mxu0 0.0
    %295 = vmatprep.subr.mxu0 0.0
    %296 = vmatpush1.msra.mxu0 0.0
    %297 = vmatprep.subr.mxu0 0.0
    %298 = vmatpush1.msra.mxu0 0.0
    %299 = vmatprep.subr.mxu0 0.0
    %300 = vmatpush1.msra.mxu0 0.0
    %301 = vmatprep.subr.mxu0 0.0
    %302 = vmatpush1.msra.mxu0 0.0
    %303 = vmatprep.mubr.f32.mxu0 0.0
    %304 = vmatmul.mubr.f32.gmra.mrb[0].mxu0 %v237
    %v305 = vpop.f32.mrb[0].mxu0
    %v306 = vadd.f32 %v233, %v305
    %v307 = vpop.f32.mrb[0].mxu0
    %308 = vdwg.mxu0
    %v309 = vtanh.pop %v306
    %s310 = smul.u32 4, 128
    %s311 = smul.u32 %s310, 1
    %s312 = sshll.u32 %s311, 4
    %313 = dma.done [#allocation3], %s312
    %v314 = vld [vmem:[#allocation2] sm:$0xff]
    %v315 = vld [vmem:[#allocation2 + $0x8] sm:$0xff]
    %v316 = vld [vmem:[#allocation2 + $0x10] sm:$0xff]
    %v317 = vld [vmem:[#allocation2 + $0x18] sm:$0xff]
    %v318 = vld [vmem:[#allocation2 + $0x20] sm:$0xff]
    %v319 = vld [vmem:[#allocation2 + $0x28] sm:$0xff]
    %v320 = vld [vmem:[#allocation2 + $0x30] sm:$0xff]
    %v321 = vld [vmem:[#allocation2 + $0x38] sm:$0xff]
    %v322 = vld [vmem:[#allocation2 + $0x40] sm:$0xff]
    %v323 = vld [vmem:[#allocation2 + $0x48] sm:$0xff]
    %v324 = vld [vmem:[#allocation2 + $0x50] sm:$0xff]
    %v325 = vld [vmem:[#allocation2 + $0x58] sm:$0xff]
    %v326 = vld [vmem:[#allocation2 + $0x60] sm:$0xff]
    %v327 = vld [vmem:[#allocation2 + $0x68] sm:$0xff]
    %v328 = vld [vmem:[#allocation2 + $0x70] sm:$0xff]
    %v329 = vld [vmem:[#allocation2 + $0x78] sm:$0xff]
    %v330 = vld [vmem:[#allocation2 + $0x80] sm:$0xff]
    %v331 = vld [vmem:[#allocation2 + $0x88] sm:$0xff]
    %v332 = vld [vmem:[#allocation2 + $0x90] sm:$0xff]
    %v333 = vld [vmem:[#allocation2 + $0x98] sm:$0xff]
    %v334 = vld [vmem:[#allocation2 + $0xa0] sm:$0xff]
    %v335 = vld [vmem:[#allocation2 + $0xa8] sm:$0xff]
    %v336 = vld [vmem:[#allocation2 + $0xb0] sm:$0xff]
    %v337 = vld [vmem:[#allocation2 + $0xb8] sm:$0xff]
    %v338 = vld [vmem:[#allocation2 + $0xc0] sm:$0xff]
    %v339 = vld [vmem:[#allocation2 + $0xc8] sm:$0xff]
    %v340 = vld [vmem:[#allocation2 + $0xd0] sm:$0xff]
    %v341 = vld [vmem:[#allocation2 + $0xd8] sm:$0xff]
    %v342 = vld [vmem:[#allocation2 + $0xe0] sm:$0xff]
    %v343 = vld [vmem:[#allocation2 + $0xe8] sm:$0xff]
    %v344 = vld [vmem:[#allocation2 + $0xf0] sm:$0xff]
    %v345 = vld [vmem:[#allocation2 + $0xf8] sm:$0xff]
    %v346 = vld [vmem:[#allocation2 + $0x100] sm:$0xff]
    %v347 = vld [vmem:[#allocation2 + $0x108] sm:$0xff]
    %v348 = vld [vmem:[#allocation2 + $0x110] sm:$0xff]
    %v349 = vld [vmem:[#allocation2 + $0x118] sm:$0xff]
    %v350 = vld [vmem:[#allocation2 + $0x120] sm:$0xff]
    %v351 = vld [vmem:[#allocation2 + $0x128] sm:$0xff]
    %v352 = vld [vmem:[#allocation2 + $0x130] sm:$0xff]
    %v353 = vld [vmem:[#allocation2 + $0x138] sm:$0xff]
    %v354 = vld [vmem:[#allocation2 + $0x140] sm:$0xff]
    %v355 = vld [vmem:[#allocation2 + $0x148] sm:$0xff]
    %v356 = vld [vmem:[#allocation2 + $0x150] sm:$0xff]
    %v357 = vld [vmem:[#allocation2 + $0x158] sm:$0xff]
    %v358 = vld [vmem:[#allocation2 + $0x160] sm:$0xff]
    %v359 = vld [vmem:[#allocation2 + $0x168] sm:$0xff]
    %v360 = vld [vmem:[#allocation2 + $0x170] sm:$0xff]
    %v361 = vld [vmem:[#allocation2 + $0x178] sm:$0xff]
    %v362 = vld [vmem:[#allocation2 + $0x180] sm:$0xff]
    %v363 = vld [vmem:[#allocation2 + $0x188] sm:$0xff]
    %v364 = vld [vmem:[#allocation2 + $0x190] sm:$0xff]
    %v365 = vld [vmem:[#allocation2 + $0x198] sm:$0xff]
    %v366 = vld [vmem:[#allocation2 + $0x1a0] sm:$0xff]
    %v367 = vld [vmem:[#allocation2 + $0x1a8] sm:$0xff]
    %v368 = vld [vmem:[#allocation2 + $0x1b0] sm:$0xff]
    %v369 = vld [vmem:[#allocation2 + $0x1b8] sm:$0xff]
    %v370 = vld [vmem:[#allocation2 + $0x1c0] sm:$0xff]
    %v371 = vld [vmem:[#allocation2 + $0x1c8] sm:$0xff]
    %v372 = vld [vmem:[#allocation2 + $0x1d0] sm:$0xff]
    %v373 = vld [vmem:[#allocation2 + $0x1d8] sm:$0xff]
    %v374 = vld [vmem:[#allocation2 + $0x1e0] sm:$0xff]
    %v375 = vld [vmem:[#allocation2 + $0x1e8] sm:$0xff]
    %v376 = vld [vmem:[#allocation2 + $0x1f0] sm:$0xff]
    %v377 = vld [vmem:[#allocation2 + $0x1f8] sm:$0xff]
    %v378 = vld [vmem:[%s4] sm:$0xf]
    %v379 = vld [vmem:[%s4 + $0x4] sm:$0xf]
    %v380 = vld [vmem:[%s4 + $0x8] sm:$0xf]
    %v381 = vld [vmem:[%s4 + $0xc] sm:$0xf]
    %v382 = vld [vmem:[%s4 + $0x10] sm:$0xf]
    %v383 = vld [vmem:[%s4 + $0x14] sm:$0xf]
    %v384 = vld [vmem:[%s4 + $0x18] sm:$0xf]
    %v385 = vld [vmem:[%s4 + $0x1c] sm:$0xf]
    %v386 = vld [vmem:[%s4 + $0x20] sm:$0xf]
    %v387 = vld [vmem:[%s5] sm:$0x1]
    %v389 = vlaneseq
    %v390 = vshrl.u32 %v389, 7
    %v391 = vsub.s32 0, %v390
    %v392 = vrot.slane %v387, %v391
    %v403 = vunpack.c.l.b16 %v378
    %v404 = vunpack.c.l.b16 %v379
    %v405 = vunpack.c.l.b16 %v380
    %v406 = vunpack.c.l.b16 %v381
    %v407 = vunpack.c.l.b16 %v382
    %v408 = vunpack.c.l.b16 %v383
    %v409 = vunpack.c.l.b16 %v384
    %v410 = vunpack.c.l.b16 %v385
    %v411 = vunpack.c.l.b16 %v386
    %v412 = vpack.c.b16 %v404, %v403
    %v413 = vpack.c.b16 %v406, %v405
    %v414 = vpack.c.b16 %v408, %v407
    %v415 = vpack.c.b16 %v410, %v409
    %v416 = vpack.c.b16 %v411, %v411
    %vm421 = vcmask 588800
    %v423 = vsel %vm421, %v314, 0
    %v426 = vsel %vm421, %v315, 0
    %v429 = vsel %vm421, %v316, 0
    %v432 = vsel %vm421, %v317, 0
    %v435 = vsel %vm421, %v318, 0
    %v438 = vsel %vm421, %v319, 0
    %v441 = vsel %vm421, %v320, 0
    %v444 = vsel %vm421, %v321, 0
    %v447 = vsel %vm421, %v322, 0
    %v450 = vsel %vm421, %v323, 0
    %v453 = vsel %vm421, %v324, 0
    %v456 = vsel %vm421, %v325, 0
    %v459 = vsel %vm421, %v326, 0
    %v462 = vsel %vm421, %v327, 0
    %v465 = vsel %vm421, %v328, 0
    %v468 = vsel %vm421, %v329, 0
    %v471 = vsel %vm421, %v330, 0
    %v474 = vsel %vm421, %v331, 0
    %v477 = vsel %vm421, %v332, 0
    %v480 = vsel %vm421, %v333, 0
    %v483 = vsel %vm421, %v334, 0
    %v486 = vsel %vm421, %v335, 0
    %v489 = vsel %vm421, %v336, 0
    %v492 = vsel %vm421, %v337, 0
    %v495 = vsel %vm421, %v338, 0
    %v498 = vsel %vm421, %v339, 0
    %v501 = vsel %vm421, %v340, 0
    %v504 = vsel %vm421, %v341, 0
    %v507 = vsel %vm421, %v342, 0
    %v510 = vsel %vm421, %v343, 0
    %v513 = vsel %vm421, %v344, 0
    %v516 = vsel %vm421, %v345, 0
    %v519 = vsel %vm421, %v346, 0
    %v522 = vsel %vm421, %v347, 0
    %v525 = vsel %vm421, %v348, 0
    %v528 = vsel %vm421, %v349, 0
    %v531 = vsel %vm421, %v350, 0
    %v534 = vsel %vm421, %v351, 0
    %v537 = vsel %vm421, %v352, 0
    %v540 = vsel %vm421, %v353, 0
    %v543 = vsel %vm421, %v354, 0
    %v546 = vsel %vm421, %v355, 0
    %v549 = vsel %vm421, %v356, 0
    %v552 = vsel %vm421, %v357, 0
    %v555 = vsel %vm421, %v358, 0
    %v558 = vsel %vm421, %v359, 0
    %v561 = vsel %vm421, %v360, 0
    %v564 = vsel %vm421, %v361, 0
    %v567 = vsel %vm421, %v362, 0
    %v570 = vsel %vm421, %v363, 0
    %v573 = vsel %vm421, %v364, 0
    %v576 = vsel %vm421, %v365, 0
    %v579 = vsel %vm421, %v366, 0
    %v582 = vsel %vm421, %v367, 0
    %v585 = vsel %vm421, %v368, 0
    %v588 = vsel %vm421, %v369, 0
    %v591 = vsel %vm421, %v370, 0
    %v594 = vsel %vm421, %v371, 0
    %v597 = vsel %vm421, %v372, 0
    %v600 = vsel %vm421, %v373, 0
    %v603 = vsel %vm421, %v374, 0
    %v606 = vsel %vm421, %v375, 0
    %v609 = vsel %vm421, %v376, 0
    %v612 = vsel %vm421, %v377, 0
    %vm614 = vcmask 1043456
    %v616 = vsel %vm614, %v416, 0
    %618 = vmatprep.subr.bf16.mxu0 0
    %619 = vmatpush1.bf16.msra.mxu0 %v412
    %620 = vmatprep.subr.bf16.mxu0 0
    %621 = vmatpush1.bf16.msra.mxu0 %v413
    %622 = vmatprep.subr.bf16.mxu0 0
    %623 = vmatpush1.bf16.msra.mxu0 %v414
    %624 = vmatprep.subr.bf16.mxu0 0
    %625 = vmatpush1.bf16.msra.mxu0 %v415
    %626 = vmatprep.subr.bf16.mxu0 0
    %627 = vmatpush1.bf16.msra.mxu0 %v616
    %628 = vmatprep.subr.bf16.mxu0 0
    %629 = vmatpush1.bf16.msra.mxu0 0
    %630 = vmatprep.subr.bf16.mxu0 0
    %631 = vmatpush1.bf16.msra.mxu0 0
    %632 = vmatprep.subr.bf16.mxu0 0
    %633 = vmatpush1.bf16.msra.mxu0 0
    %634 = vmatprep.subr.bf16.mxu0 0
    %635 = vmatpush1.bf16.msra.mxu0 0
    %636 = vmatprep.subr.bf16.mxu0 0
    %637 = vmatpush1.bf16.msra.mxu0 0
    %638 = vmatprep.subr.bf16.mxu0 0
    %639 = vmatpush1.bf16.msra.mxu0 0
    %640 = vmatprep.subr.bf16.mxu0 0
    %641 = vmatpush1.bf16.msra.mxu0 0
    %642 = vmatprep.subr.bf16.mxu0 0
    %643 = vmatpush1.bf16.msra.mxu0 0
    %644 = vmatprep.subr.bf16.mxu0 0
    %645 = vmatpush1.bf16.msra.mxu0 0
    %646 = vmatprep.subr.bf16.mxu0 0
    %647 = vmatpush1.bf16.msra.mxu0 0
    %648 = vmatprep.subr.bf16.mxu0 0
    %649 = vmatpush1.bf16.msra.mxu0 0
    %650 = vmatprep.mubr.bf16.mxu0 0
    %651 = vmatmul.mubr.bf16.gmra.mrb[0].mxu0 %v423
    %v652 = vpop.f32.mrb[0].mxu0
    %v653 = vadd.f32 %v392, %v652
    %v654 = vpop.f32.mrb[0].mxu0
    %v655 = vpop.f32.mrb[0].mxu0
    %v656 = vadd.f32 %v392, %v655
    %v657 = vpop.f32.mrb[0].mxu0
    %658 = vmatprep.mubr.bf16.mxu0 0
    %659 = vmatmul.mubr.bf16.gmra.mrb[0].mxu0 %v426
    %v660 = vpop.f32.mrb[0].mxu0
    %v661 = vadd.f32 %v392, %v660
    %v662 = vpop.f32.mrb[0].mxu0
    %v663 = vpop.f32.mrb[0].mxu0
    %v664 = vadd.f32 %v392, %v663
    %v665 = vpop.f32.mrb[0].mxu0
    %666 = vmatprep.mubr.bf16.mxu0 0
    %667 = vmatmul.mubr.bf16.gmra.mrb[0].mxu0 %v429
    %v668 = vpop.f32.mrb[0].mxu0
    %v669 = vadd.f32 %v392, %v668
    %v670 = vpop.f32.mrb[0].mxu0
    %v671 = vpop.f32.mrb[0].mxu0
    %v672 = vadd.f32 %v392, %v671
    %v673 = vpop.f32.mrb[0].mxu0
    %674 = vmatprep.mubr.bf16.mxu0 0
    %675 = vmatmul.mubr.bf16.gmra.mrb[0].mxu0 %v432
    %v676 = vpop.f32.mrb[0].mxu0
    %v677 = vadd.f32 %v392, %v676
    %v678 = vpop.f32.mrb[0].mxu0
    %v679 = vpop.f32.mrb[0].mxu0
    %v680 = vadd.f32 %v392, %v679
    %v681 = vpop.f32.mrb[0].mxu0
    %682 = vmatprep.mubr.bf16.mxu0 0
    %683 = vmatmul.mubr.bf16.gmra.mrb[0].mxu0 %v435
    %v684 = vpop.f32.mrb[0].mxu0
    %v685 = vadd.f32 %v392, %v684
    %v686 = vpop.f32.mrb[0].mxu0
    %v687 = vpop.f32.mrb[0].mxu0
    %v688 = vadd.f32 %v392, %v687
    %v689 = vpop.f32.mrb[0].mxu0
    %690 = vmatprep.mubr.bf16.mxu0 0
    %691 = vmatmul.mubr.bf16.gmra.mrb[0].mxu0 %v438
    %v692 = vpop.f32.mrb[0].mxu0
    %v693 = vadd.f32 %v392, %v692
    %v694 = vpop.f32.mrb[0].mxu0
    %v695 = vpop.f32.mrb[0].mxu0
    %v696 = vadd.f32 %v392, %v695
    %v697 = vpop.f32.mrb[0].mxu0
    %698 = vmatprep.mubr.bf16.mxu0 0
    %699 = vmatmul.mubr.bf16.gmra.mrb[0].mxu0 %v441
    %v700 = vpop.f32.mrb[0].mxu0
    %v701 = vadd.f32 %v392, %v700
    %v702 = vpop.f32.mrb[0].mxu0
    %v703 = vpop.f32.mrb[0].mxu0
    %v704 = vadd.f32 %v392, %v703
    %v705 = vpop.f32.mrb[0].mxu0
    %706 = vmatprep.mubr.bf16.mxu0 0
    %707 = vmatmul.mubr.bf16.gmra.mrb[0].mxu0 %v444
    %v708 = vpop.f32.mrb[0].mxu0
    %v709 = vadd.f32 %v392, %v708
    %v710 = vpop.f32.mrb[0].mxu0
    %v711 = vpop.f32.mrb[0].mxu0
    %v712 = vadd.f32 %v392, %v711
    %v713 = vpop.f32.mrb[0].mxu0
    %714 = vmatprep.mubr.bf16.mxu0 0
    %715 = vmatmul.mubr.bf16.gmra.mrb[0].mxu0 %v447
    %v716 = vpop.f32.mrb[0].mxu0
    %v717 = vadd.f32 %v392, %v716
    %v718 = vpop.f32.mrb[0].mxu0
    %v719 = vpop.f32.mrb[0].mxu0
    %v720 = vadd.f32 %v392, %v719
    %v721 = vpop.f32.mrb[0].mxu0
    %722 = vmatprep.mubr.bf16.mxu0 0
    %723 = vmatmul.mubr.bf16.gmra.mrb[0].mxu0 %v450
    %v724 = vpop.f32.mrb[0].mxu0
    %v725 = vadd.f32 %v392, %v724
    %v726 = vpop.f32.mrb[0].mxu0
    %v727 = vpop.f32.mrb[0].mxu0
    %v728 = vadd.f32 %v392, %v727
    %v729 = vpop.f32.mrb[0].mxu0
    %730 = vmatprep.mubr.bf16.mxu0 0
    %731 = vmatmul.mubr.bf16.gmra.mrb[0].mxu0 %v453
    %v732 = vpop.f32.mrb[0].mxu0
    %v733 = vadd.f32 %v392, %v732
    %v734 = vpop.f32.mrb[0].mxu0
    %v735 = vpop.f32.mrb[0].mxu0
    %v736 = vadd.f32 %v392, %v735
    %v737 = vpop.f32.mrb[0].mxu0
    %738 = vmatprep.mubr.bf16.mxu0 0
    %739 = vmatmul.mubr.bf16.gmra.mrb[0].mxu0 %v456
    %v740 = vpop.f32.mrb[0].mxu0
    %v741 = vadd.f32 %v392, %v740
    %v742 = vpop.f32.mrb[0].mxu0
    %v743 = vpop.f32.mrb[0].mxu0
    %v744 = vadd.f32 %v392, %v743
    %v745 = vpop.f32.mrb[0].mxu0
    %746 = vmatprep.mubr.bf16.mxu0 0
    %747 = vmatmul.mubr.bf16.gmra.mrb[0].mxu0 %v459
    %v748 = vpop.f32.mrb[0].mxu0
    %v749 = vadd.f32 %v392, %v748
    %v750 = vpop.f32.mrb[0].mxu0
    %v751 = vpop.f32.mrb[0].mxu0
    %v752 = vadd.f32 %v392, %v751
    %v753 = vpop.f32.mrb[0].mxu0
    %754 = vmatprep.mubr.bf16.mxu0 0
    %755 = vmatmul.mubr.bf16.gmra.mrb[0].mxu0 %v462
    %v756 = vpop.f32.mrb[0].mxu0
    %v757 = vadd.f32 %v392, %v756
    %v758 = vpop.f32.mrb[0].mxu0
    %v759 = vpop.f32.mrb[0].mxu0
    %v760 = vadd.f32 %v392, %v759
    %v761 = vpop.f32.mrb[0].mxu0
    %762 = vmatprep.mubr.bf16.mxu0 0
    %763 = vmatmul.mubr.bf16.gmra.mrb[0].mxu0 %v465
    %v764 = vpop.f32.mrb[0].mxu0
    %v765 = vadd.f32 %v392, %v764
    %v766 = vpop.f32.mrb[0].mxu0
    %v767 = vpop.f32.mrb[0].mxu0
    %v768 = vadd.f32 %v392, %v767
    %v769 = vpop.f32.mrb[0].mxu0
    %770 = vmatprep.mubr.bf16.mxu0 0
    %771 = vmatmul.mubr.bf16.gmra.mrb[0].mxu0 %v468
    %v772 = vpop.f32.mrb[0].mxu0
    %v773 = vadd.f32 %v392, %v772
    %v774 = vpop.f32.mrb[0].mxu0
    %v775 = vpop.f32.mrb[0].mxu0
    %v776 = vadd.f32 %v392, %v775
    %v777 = vpop.f32.mrb[0].mxu0
    %778 = vmatprep.mubr.bf16.mxu0 0
    %779 = vmatmul.mubr.bf16.gmra.mrb[0].mxu0 %v471
    %v780 = vpop.f32.mrb[0].mxu0
    %v781 = vadd.f32 %v392, %v780
    %v782 = vpop.f32.mrb[0].mxu0
    %v783 = vpop.f32.mrb[0].mxu0
    %v784 = vadd.f32 %v392, %v783
    %v785 = vpop.f32.mrb[0].mxu0
    %786 = vmatprep.mubr.bf16.mxu0 0
    %787 = vmatmul.mubr.bf16.gmra.mrb[0].mxu0 %v474
    %v788 = vpop.f32.mrb[0].mxu0
    %v789 = vadd.f32 %v392, %v788
    %v790 = vpop.f32.mrb[0].mxu0
    %v791 = vpop.f32.mrb[0].mxu0
    %v792 = vadd.f32 %v392, %v791
    %v793 = vpop.f32.mrb[0].mxu0
    %794 = vmatprep.mubr.bf16.mxu0 0
    %795 = vmatmul.mubr.bf16.gmra.mrb[0].mxu0 %v477
    %v796 = vpop.f32.mrb[0].mxu0
    %v797 = vadd.f32 %v392, %v796
    %v798 = vpop.f32.mrb[0].mxu0
    %v799 = vpop.f32.mrb[0].mxu0
    %v800 = vadd.f32 %v392, %v799
    %v801 = vpop.f32.mrb[0].mxu0
    %802 = vmatprep.mubr.bf16.mxu0 0
    %803 = vmatmul.mubr.bf16.gmra.mrb[0].mxu0 %v480
    %v804 = vpop.f32.mrb[0].mxu0
    %v805 = vadd.f32 %v392, %v804
    %v806 = vpop.f32.mrb[0].mxu0
    %v807 = vpop.f32.mrb[0].mxu0
    %v808 = vadd.f32 %v392, %v807
    %v809 = vpop.f32.mrb[0].mxu0
    %810 = vmatprep.mubr.bf16.mxu0 0
    %811 = vmatmul.mubr.bf16.gmra.mrb[0].mxu0 %v483
    %v812 = vpop.f32.mrb[0].mxu0
    %v813 = vadd.f32 %v392, %v812
    %v814 = vpop.f32.mrb[0].mxu0
    %v815 = vpop.f32.mrb[0].mxu0
    %v816 = vadd.f32 %v392, %v815
    %v817 = vpop.f32.mrb[0].mxu0
    %818 = vmatprep.mubr.bf16.mxu0 0
    %819 = vmatmul.mubr.bf16.gmra.mrb[0].mxu0 %v486
    %v820 = vpop.f32.mrb[0].mxu0
    %v821 = vadd.f32 %v392, %v820
    %v822 = vpop.f32.mrb[0].mxu0
    %v823 = vpop.f32.mrb[0].mxu0
    %v824 = vadd.f32 %v392, %v823
    %v825 = vpop.f32.mrb[0].mxu0
    %826 = vmatprep.mubr.bf16.mxu0 0
    %827 = vmatmul.mubr.bf16.gmra.mrb[0].mxu0 %v489
    %v828 = vpop.f32.mrb[0].mxu0
    %v829 = vadd.f32 %v392, %v828
    %v830 = vpop.f32.mrb[0].mxu0
    %v831 = vpop.f32.mrb[0].mxu0
    %v832 = vadd.f32 %v392, %v831
    %v833 = vpop.f32.mrb[0].mxu0
    %834 = vmatprep.mubr.bf16.mxu0 0
    %835 = vmatmul.mubr.bf16.gmra.mrb[0].mxu0 %v492
    %v836 = vpop.f32.mrb[0].mxu0
    %v837 = vadd.f32 %v392, %v836
    %v838 = vpop.f32.mrb[0].mxu0
    %v839 = vpop.f32.mrb[0].mxu0
    %v840 = vadd.f32 %v392, %v839
    %v841 = vpop.f32.mrb[0].mxu0
    %842 = vmatprep.mubr.bf16.mxu0 0
    %843 = vmatmul.mubr.bf16.gmra.mrb[0].mxu0 %v495
    %v844 = vpop.f32.mrb[0].mxu0
    %v845 = vadd.f32 %v392, %v844
    %v846 = vpop.f32.mrb[0].mxu0
    %v847 = vpop.f32.mrb[0].mxu0
    %v848 = vadd.f32 %v392, %v847
    %v849 = vpop.f32.mrb[0].mxu0
    %850 = vmatprep.mubr.bf16.mxu0 0
    %851 = vmatmul.mubr.bf16.gmra.mrb[0].mxu0 %v498
    %v852 = vpop.f32.mrb[0].mxu0
    %v853 = vadd.f32 %v392, %v852
    %v854 = vpop.f32.mrb[0].mxu0
    %v855 = vpop.f32.mrb[0].mxu0
    %v856 = vadd.f32 %v392, %v855
    %v857 = vpop.f32.mrb[0].mxu0
    %858 = vmatprep.mubr.bf16.mxu0 0
    %859 = vmatmul.mubr.bf16.gmra.mrb[0].mxu0 %v501
    %v860 = vpop.f32.mrb[0].mxu0
    %v861 = vadd.f32 %v392, %v860
    %v862 = vpop.f32.mrb[0].mxu0
    %v863 = vpop.f32.mrb[0].mxu0
    %v864 = vadd.f32 %v392, %v863
    %v865 = vpop.f32.mrb[0].mxu0
    %866 = vmatprep.mubr.bf16.mxu0 0
    %867 = vmatmul.mubr.bf16.gmra.mrb[0].mxu0 %v504
    %v868 = vpop.f32.mrb[0].mxu0
    %v869 = vadd.f32 %v392, %v868
    %v870 = vpop.f32.mrb[0].mxu0
    %v871 = vpop.f32.mrb[0].mxu0
    %v872 = vadd.f32 %v392, %v871
    %v873 = vpop.f32.mrb[0].mxu0
    %874 = vmatprep.mubr.bf16.mxu0 0
    %875 = vmatmul.mubr.bf16.gmra.mrb[0].mxu0 %v507
    %v876 = vpop.f32.mrb[0].mxu0
    %v877 = vadd.f32 %v392, %v876
    %v878 = vpop.f32.mrb[0].mxu0
    %v879 = vpop.f32.mrb[0].mxu0
    %v880 = vadd.f32 %v392, %v879
    %v881 = vpop.f32.mrb[0].mxu0
    %882 = vmatprep.mubr.bf16.mxu0 0
    %883 = vmatmul.mubr.bf16.gmra.mrb[0].mxu0 %v510
    %v884 = vpop.f32.mrb[0].mxu0
    %v885 = vadd.f32 %v392, %v884
    %v886 = vpop.f32.mrb[0].mxu0
    %v887 = vpop.f32.mrb[0].mxu0
    %v888 = vadd.f32 %v392, %v887
    %v889 = vpop.f32.mrb[0].mxu0
    %890 = vmatprep.mubr.bf16.mxu0 0
    %891 = vmatmul.mubr.bf16.gmra.mrb[0].mxu0 %v513
    %v892 = vpop.f32.mrb[0].mxu0
    %v893 = vadd.f32 %v392, %v892
    %v894 = vpop.f32.mrb[0].mxu0
    %v895 = vpop.f32.mrb[0].mxu0
    %v896 = vadd.f32 %v392, %v895
    %v897 = vpop.f32.mrb[0].mxu0
    %898 = vmatprep.mubr.bf16.mxu0 0
    %899 = vmatmul.mubr.bf16.gmra.mrb[0].mxu0 %v516
    %v900 = vpop.f32.mrb[0].mxu0
    %v901 = vadd.f32 %v392, %v900
    %v902 = vpop.f32.mrb[0].mxu0
    %v903 = vpop.f32.mrb[0].mxu0
    %v904 = vadd.f32 %v392, %v903
    %v905 = vpop.f32.mrb[0].mxu0
    %906 = vmatprep.mubr.bf16.mxu0 0
    %907 = vmatmul.mubr.bf16.gmra.mrb[0].mxu0 %v519
    %v908 = vpop.f32.mrb[0].mxu0
    %v909 = vadd.f32 %v392, %v908
    %v910 = vpop.f32.mrb[0].mxu0
    %v911 = vpop.f32.mrb[0].mxu0
    %v912 = vadd.f32 %v392, %v911
    %v913 = vpop.f32.mrb[0].mxu0
    %914 = vmatprep.mubr.bf16.mxu0 0
    %915 = vmatmul.mubr.bf16.gmra.mrb[0].mxu0 %v522
    %v916 = vpop.f32.mrb[0].mxu0
    %v917 = vadd.f32 %v392, %v916
    %v918 = vpop.f32.mrb[0].mxu0
    %v919 = vpop.f32.mrb[0].mxu0
    %v920 = vadd.f32 %v392, %v919
    %v921 = vpop.f32.mrb[0].mxu0
    %922 = vmatprep.mubr.bf16.mxu0 0
    %923 = vmatmul.mubr.bf16.gmra.mrb[0].mxu0 %v525
    %v924 = vpop.f32.mrb[0].mxu0
    %v925 = vadd.f32 %v392, %v924
    %v926 = vpop.f32.mrb[0].mxu0
    %v927 = vpop.f32.mrb[0].mxu0
    %v928 = vadd.f32 %v392, %v927
    %v929 = vpop.f32.mrb[0].mxu0
    %930 = vmatprep.mubr.bf16.mxu0 0
    %931 = vmatmul.mubr.bf16.gmra.mrb[0].mxu0 %v528
    %v932 = vpop.f32.mrb[0].mxu0
    %v933 = vadd.f32 %v392, %v932
    %v934 = vpop.f32.mrb[0].mxu0
    %v935 = vpop.f32.mrb[0].mxu0
    %v936 = vadd.f32 %v392, %v935
    %v937 = vpop.f32.mrb[0].mxu0
    %938 = vmatprep.mubr.bf16.mxu0 0
    %939 = vmatmul.mubr.bf16.gmra.mrb[0].mxu0 %v531
    %v940 = vpop.f32.mrb[0].mxu0
    %v941 = vadd.f32 %v392, %v940
    %v942 = vpop.f32.mrb[0].mxu0
    %v943 = vpop.f32.mrb[0].mxu0
    %v944 = vadd.f32 %v392, %v943
    %v945 = vpop.f32.mrb[0].mxu0
    %946 = vmatprep.mubr.bf16.mxu0 0
    %947 = vmatmul.mubr.bf16.gmra.mrb[0].mxu0 %v534
    %v948 = vpop.f32.mrb[0].mxu0
    %v949 = vadd.f32 %v392, %v948
    %v950 = vpop.f32.mrb[0].mxu0
    %v951 = vpop.f32.mrb[0].mxu0
    %v952 = vadd.f32 %v392, %v951
    %v953 = vpop.f32.mrb[0].mxu0
    %954 = vmatprep.mubr.bf16.mxu0 0
    %955 = vmatmul.mubr.bf16.gmra.mrb[0].mxu0 %v537
    %v956 = vpop.f32.mrb[0].mxu0
    %v957 = vadd.f32 %v392, %v956
    %v958 = vpop.f32.mrb[0].mxu0
    %v959 = vpop.f32.mrb[0].mxu0
    %v960 = vadd.f32 %v392, %v959
    %v961 = vpop.f32.mrb[0].mxu0
    %962 = vmatprep.mubr.bf16.mxu0 0
    %963 = vmatmul.mubr.bf16.gmra.mrb[0].mxu0 %v540
    %v964 = vpop.f32.mrb[0].mxu0
    %v965 = vadd.f32 %v392, %v964
    %v966 = vpop.f32.mrb[0].mxu0
    %v967 = vpop.f32.mrb[0].mxu0
    %v968 = vadd.f32 %v392, %v967
    %v969 = vpop.f32.mrb[0].mxu0
    %970 = vmatprep.mubr.bf16.mxu0 0
    %971 = vmatmul.mubr.bf16.gmra.mrb[0].mxu0 %v543
    %v972 = vpop.f32.mrb[0].mxu0
    %v973 = vadd.f32 %v392, %v972
    %v974 = vpop.f32.mrb[0].mxu0
    %v975 = vpop.f32.mrb[0].mxu0
    %v976 = vadd.f32 %v392, %v975
    %v977 = vpop.f32.mrb[0].mxu0
    %978 = vmatprep.mubr.bf16.mxu0 0
    %979 = vmatmul.mubr.bf16.gmra.mrb[0].mxu0 %v546
    %v980 = vpop.f32.mrb[0].mxu0
    %v981 = vadd.f32 %v392, %v980
    %v982 = vpop.f32.mrb[0].mxu0
    %v983 = vpop.f32.mrb[0].mxu0
    %v984 = vadd.f32 %v392, %v983
    %v985 = vpop.f32.mrb[0].mxu0
    %986 = vmatprep.mubr.bf16.mxu0 0
    %987 = vmatmul.mubr.bf16.gmra.mrb[0].mxu0 %v549
    %v988 = vpop.f32.mrb[0].mxu0
    %v989 = vadd.f32 %v392, %v988
    %v990 = vpop.f32.mrb[0].mxu0
    %v991 = vpop.f32.mrb[0].mxu0
    %v992 = vadd.f32 %v392, %v991
    %v993 = vpop.f32.mrb[0].mxu0
    %994 = vmatprep.mubr.bf16.mxu0 0
    %995 = vmatmul.mubr.bf16.gmra.mrb[0].mxu0 %v552
    %v996 = vpop.f32.mrb[0].mxu0
    %v997 = vadd.f32 %v392, %v996
    %v998 = vpop.f32.mrb[0].mxu0
    %v999 = vpop.f32.mrb[0].mxu0
    %v1000 = vadd.f32 %v392, %v999
    %v1001 = vpop.f32.mrb[0].mxu0
    %1002 = vmatprep.mubr.bf16.mxu0 0
    %1003 = vmatmul.mubr.bf16.gmra.mrb[0].mxu0 %v555
    %v1004 = vpop.f32.mrb[0].mxu0
    %v1005 = vadd.f32 %v392, %v1004
    %v1006 = vpop.f32.mrb[0].mxu0
    %v1007 = vpop.f32.mrb[0].mxu0
    %v1008 = vadd.f32 %v392, %v1007
    %v1009 = vpop.f32.mrb[0].mxu0
    %1010 = vmatprep.mubr.bf16.mxu0 0
    %1011 = vmatmul.mubr.bf16.gmra.mrb[0].mxu0 %v558
    %v1012 = vpop.f32.mrb[0].mxu0
    %v1013 = vadd.f32 %v392, %v1012
    %v1014 = vpop.f32.mrb[0].mxu0
    %v1015 = vpop.f32.mrb[0].mxu0
    %v1016 = vadd.f32 %v392, %v1015
    %v1017 = vpop.f32.mrb[0].mxu0
    %1018 = vmatprep.mubr.bf16.mxu0 0
    %1019 = vmatmul.mubr.bf16.gmra.mrb[0].mxu0 %v561
    %v1020 = vpop.f32.mrb[0].mxu0
    %v1021 = vadd.f32 %v392, %v1020
    %v1022 = vpop.f32.mrb[0].mxu0
    %v1023 = vpop.f32.mrb[0].mxu0
    %v1024 = vadd.f32 %v392, %v1023
    %v1025 = vpop.f32.mrb[0].mxu0
    %1026 = vmatprep.mubr.bf16.mxu0 0
    %1027 = vmatmul.mubr.bf16.gmra.mrb[0].mxu0 %v564
    %v1028 = vpop.f32.mrb[0].mxu0
    %v1029 = vadd.f32 %v392, %v1028
    %v1030 = vpop.f32.mrb[0].mxu0
    %v1031 = vpop.f32.mrb[0].mxu0
    %v1032 = vadd.f32 %v392, %v1031
    %v1033 = vpop.f32.mrb[0].mxu0
    %1034 = vmatprep.mubr.bf16.mxu0 0
    %1035 = vmatmul.mubr.bf16.gmra.mrb[0].mxu0 %v567
    %v1036 = vpop.f32.mrb[0].mxu0
    %v1037 = vadd.f32 %v392, %v1036
    %v1038 = vpop.f32.mrb[0].mxu0
    %v1039 = vpop.f32.mrb[0].mxu0
    %v1040 = vadd.f32 %v392, %v1039
    %v1041 = vpop.f32.mrb[0].mxu0
    %1042 = vmatprep.mubr.bf16.mxu0 0
    %1043 = vmatmul.mubr.bf16.gmra.mrb[0].mxu0 %v570
    %v1044 = vpop.f32.mrb[0].mxu0
    %v1045 = vadd.f32 %v392, %v1044
    %v1046 = vpop.f32.mrb[0].mxu0
    %v1047 = vpop.f32.mrb[0].mxu0
    %v1048 = vadd.f32 %v392, %v1047
    %v1049 = vpop.f32.mrb[0].mxu0
    %1050 = vmatprep.mubr.bf16.mxu0 0
    %1051 = vmatmul.mubr.bf16.gmra.mrb[0].mxu0 %v573
    %v1052 = vpop.f32.mrb[0].mxu0
    %v1053 = vadd.f32 %v392, %v1052
    %v1054 = vpop.f32.mrb[0].mxu0
    %v1055 = vpop.f32.mrb[0].mxu0
    %v1056 = vadd.f32 %v392, %v1055
    %v1057 = vpop.f32.mrb[0].mxu0
    %1058 = vmatprep.mubr.bf16.mxu0 0
    %1059 = vmatmul.mubr.bf16.gmra.mrb[0].mxu0 %v576
    %v1060 = vpop.f32.mrb[0].mxu0
    %v1061 = vadd.f32 %v392, %v1060
    %v1062 = vpop.f32.mrb[0].mxu0
    %v1063 = vpop.f32.mrb[0].mxu0
    %v1064 = vadd.f32 %v392, %v1063
    %v1065 = vpop.f32.mrb[0].mxu0
    %1066 = vmatprep.mubr.bf16.mxu0 0
    %1067 = vmatmul.mubr.bf16.gmra.mrb[0].mxu0 %v579
    %v1068 = vpop.f32.mrb[0].mxu0
    %v1069 = vadd.f32 %v392, %v1068
    %v1070 = vpop.f32.mrb[0].mxu0
    %v1071 = vpop.f32.mrb[0].mxu0
    %v1072 = vadd.f32 %v392, %v1071
    %v1073 = vpop.f32.mrb[0].mxu0
    %1074 = vmatprep.mubr.bf16.mxu0 0
    %1075 = vmatmul.mubr.bf16.gmra.mrb[0].mxu0 %v582
    %v1076 = vpop.f32.mrb[0].mxu0
    %v1077 = vadd.f32 %v392, %v1076
    %v1078 = vpop.f32.mrb[0].mxu0
    %v1079 = vpop.f32.mrb[0].mxu0
    %v1080 = vadd.f32 %v392, %v1079
    %v1081 = vpop.f32.mrb[0].mxu0
    %1082 = vmatprep.mubr.bf16.mxu0 0
    %1083 = vmatmul.mubr.bf16.gmra.mrb[0].mxu0 %v585
    %v1084 = vpop.f32.mrb[0].mxu0
    %v1085 = vadd.f32 %v392, %v1084
    %v1086 = vpop.f32.mrb[0].mxu0
    %v1087 = vpop.f32.mrb[0].mxu0
    %v1088 = vadd.f32 %v392, %v1087
    %v1089 = vpop.f32.mrb[0].mxu0
    %1090 = vmatprep.mubr.bf16.mxu0 0
    %1091 = vmatmul.mubr.bf16.gmra.mrb[0].mxu0 %v588
    %v1092 = vpop.f32.mrb[0].mxu0
    %v1093 = vadd.f32 %v392, %v1092
    %v1094 = vpop.f32.mrb[0].mxu0
    %v1095 = vpop.f32.mrb[0].mxu0
    %v1096 = vadd.f32 %v392, %v1095
    %v1097 = vpop.f32.mrb[0].mxu0
    %1098 = vmatprep.mubr.bf16.mxu0 0
    %1099 = vmatmul.mubr.bf16.gmra.mrb[0].mxu0 %v591
    %v1100 = vpop.f32.mrb[0].mxu0
    %v1101 = vadd.f32 %v392, %v1100
    %v1102 = vpop.f32.mrb[0].mxu0
    %v1103 = vpop.f32.mrb[0].mxu0
    %v1104 = vadd.f32 %v392, %v1103
    %v1105 = vpop.f32.mrb[0].mxu0
    %1106 = vmatprep.mubr.bf16.mxu0 0
    %1107 = vmatmul.mubr.bf16.gmra.mrb[0].mxu0 %v594
    %v1108 = vpop.f32.mrb[0].mxu0
    %v1109 = vadd.f32 %v392, %v1108
    %v1110 = vpop.f32.mrb[0].mxu0
    %v1111 = vpop.f32.mrb[0].mxu0
    %v1112 = vadd.f32 %v392, %v1111
    %v1113 = vpop.f32.mrb[0].mxu0
    %1114 = vmatprep.mubr.bf16.mxu0 0
    %1115 = vmatmul.mubr.bf16.gmra.mrb[0].mxu0 %v597
    %v1116 = vpop.f32.mrb[0].mxu0
    %v1117 = vadd.f32 %v392, %v1116
    %v1118 = vpop.f32.mrb[0].mxu0
    %v1119 = vpop.f32.mrb[0].mxu0
    %v1120 = vadd.f32 %v392, %v1119
    %v1121 = vpop.f32.mrb[0].mxu0
    %1122 = vmatprep.mubr.bf16.mxu0 0
    %1123 = vmatmul.mubr.bf16.gmra.mrb[0].mxu0 %v600
    %v1124 = vpop.f32.mrb[0].mxu0
    %v1125 = vadd.f32 %v392, %v1124
    %v1126 = vpop.f32.mrb[0].mxu0
    %v1127 = vpop.f32.mrb[0].mxu0
    %v1128 = vadd.f32 %v392, %v1127
    %v1129 = vpop.f32.mrb[0].mxu0
    %1130 = vmatprep.mubr.bf16.mxu0 0
    %1131 = vmatmul.mubr.bf16.gmra.mrb[0].mxu0 %v603
    %v1132 = vpop.f32.mrb[0].mxu0
    %v1133 = vadd.f32 %v392, %v1132
    %v1134 = vpop.f32.mrb[0].mxu0
    %v1135 = vpop.f32.mrb[0].mxu0
    %v1136 = vadd.f32 %v392, %v1135
    %v1137 = vpop.f32.mrb[0].mxu0
    %1138 = vmatprep.mubr.bf16.mxu0 0
    %1139 = vmatmul.mubr.bf16.gmra.mrb[0].mxu0 %v606
    %v1140 = vpop.f32.mrb[0].mxu0
    %v1141 = vadd.f32 %v392, %v1140
    %v1142 = vpop.f32.mrb[0].mxu0
    %v1143 = vpop.f32.mrb[0].mxu0
    %v1144 = vadd.f32 %v392, %v1143
    %v1145 = vpop.f32.mrb[0].mxu0
    %1146 = vmatprep.mubr.bf16.mxu0 0
    %1147 = vmatmul.mubr.bf16.gmra.mrb[0].mxu0 %v609
    %v1148 = vpop.f32.mrb[0].mxu0
    %v1149 = vadd.f32 %v392, %v1148
    %v1150 = vpop.f32.mrb[0].mxu0
    %v1151 = vpop.f32.mrb[0].mxu0
    %v1152 = vadd.f32 %v392, %v1151
    %v1153 = vpop.f32.mrb[0].mxu0
    %1154 = vmatprep.mubr.bf16.mxu0 0
    %1155 = vmatmul.mubr.bf16.gmra.mrb[0].mxu0 %v612
    %v1156 = vpop.f32.mrb[0].mxu0
    %v1157 = vadd.f32 %v392, %v1156
    %v1158 = vpop.f32.mrb[0].mxu0
    %v1159 = vpop.f32.mrb[0].mxu0
    %v1160 = vadd.f32 %v392, %v1159
    %v1161 = vpop.f32.mrb[0].mxu0
    %1162 = vdwg.mxu0
    %v1163 = vmax.f32 %v653, 0.0
    %v1164 = vmax.f32 %v656, 0.0
    %v1165 = vmax.f32 %v661, 0.0
    %v1166 = vmax.f32 %v664, 0.0
    %v1167 = vmax.f32 %v669, 0.0
    %v1168 = vmax.f32 %v672, 0.0
    %v1169 = vmax.f32 %v677, 0.0
    %v1170 = vmax.f32 %v680, 0.0
    %v1171 = vmax.f32 %v685, 0.0
    %v1172 = vmax.f32 %v688, 0.0
    %v1173 = vmax.f32 %v693, 0.0
    %v1174 = vmax.f32 %v696, 0.0
    %v1175 = vmax.f32 %v701, 0.0
    %v1176 = vmax.f32 %v704, 0.0
    %v1177 = vmax.f32 %v709, 0.0
    %v1178 = vmax.f32 %v712, 0.0
    %v1179 = vmax.f32 %v717, 0.0
    %v1180 = vmax.f32 %v720, 0.0
    %v1181 = vmax.f32 %v725, 0.0
    %v1182 = vmax.f32 %v728, 0.0
    %v1183 = vmax.f32 %v733, 0.0
    %v1184 = vmax.f32 %v736, 0.0
    %v1185 = vmax.f32 %v741, 0.0
    %v1186 = vmax.f32 %v744, 0.0
    %v1187 = vmax.f32 %v749, 0.0
    %v1188 = vmax.f32 %v752, 0.0
    %v1189 = vmax.f32 %v757, 0.0
    %v1190 = vmax.f32 %v760, 0.0
    %v1191 = vmax.f32 %v765, 0.0
    %v1192 = vmax.f32 %v768, 0.0
    %v1193 = vmax.f32 %v773, 0.0
    %v1194 = vmax.f32 %v776, 0.0
    %v1195 = vmax.f32 %v781, 0.0
    %v1196 = vmax.f32 %v784, 0.0
    %v1197 = vmax.f32 %v789, 0.0
    %v1198 = vmax.f32 %v792, 0.0
    %v1199 = vmax.f32 %v797, 0.0
    %v1200 = vmax.f32 %v800, 0.0
    %v1201 = vmax.f32 %v805, 0.0
    %v1202 = vmax.f32 %v808, 0.0
    %v1203 = vmax.f32 %v813, 0.0
    %v1204 = vmax.f32 %v816, 0.0
    %v1205 = vmax.f32 %v821, 0.0
    %v1206 = vmax.f32 %v824, 0.0
    %v1207 = vmax.f32 %v829, 0.0
    %v1208 = vmax.f32 %v832, 0.0
    %v1209 = vmax.f32 %v837, 0.0
    %v1210 = vmax.f32 %v840, 0.0
    %v1211 = vmax.f32 %v845, 0.0
    %v1212 = vmax.f32 %v848, 0.0
    %v1213 = vmax.f32 %v853, 0.0
    %v1214 = vmax.f32 %v856, 0.0
    %v1215 = vmax.f32 %v861, 0.0
    %v1216 = vmax.f32 %v864, 0.0
    %v1217 = vmax.f32 %v869, 0.0
    %v1218 = vmax.f32 %v872, 0.0
    %v1219 = vmax.f32 %v877, 0.0
    %v1220 = vmax.f32 %v880, 0.0
    %v1221 = vmax.f32 %v885, 0.0
    %v1222 = vmax.f32 %v888, 0.0
    %v1223 = vmax.f32 %v893, 0.0
    %v1224 = vmax.f32 %v896, 0.0
    %v1225 = vmax.f32 %v901, 0.0
    %v1226 = vmax.f32 %v904, 0.0
    %v1227 = vmax.f32 %v909, 0.0
    %v1228 = vmax.f32 %v912, 0.0
    %v1229 = vmax.f32 %v917, 0.0
    %v1230 = vmax.f32 %v920, 0.0
    %v1231 = vmax.f32 %v925, 0.0
    %v1232 = vmax.f32 %v928, 0.0
    %v1233 = vmax.f32 %v933, 0.0
    %v1234 = vmax.f32 %v936, 0.0
    %v1235 = vmax.f32 %v941, 0.0
    %v1236 = vmax.f32 %v944, 0.0
    %v1237 = vmax.f32 %v949, 0.0
    %v1238 = vmax.f32 %v952, 0.0
    %v1239 = vmax.f32 %v957, 0.0
    %v1240 = vmax.f32 %v960, 0.0
    %v1241 = vmax.f32 %v965, 0.0
    %v1242 = vmax.f32 %v968, 0.0
    %v1243 = vmax.f32 %v973, 0.0
    %v1244 = vmax.f32 %v976, 0.0
    %v1245 = vmax.f32 %v981, 0.0
    %v1246 = vmax.f32 %v984, 0.0
    %v1247 = vmax.f32 %v989, 0.0
    %v1248 = vmax.f32 %v992, 0.0
    %v1249 = vmax.f32 %v997, 0.0
    %v1250 = vmax.f32 %v1000, 0.0
    %v1251 = vmax.f32 %v1005, 0.0
    %v1252 = vmax.f32 %v1008, 0.0
    %v1253 = vmax.f32 %v1013, 0.0
    %v1254 = vmax.f32 %v1016, 0.0
    %v1255 = vmax.f32 %v1021, 0.0
    %v1256 = vmax.f32 %v1024, 0.0
    %v1257 = vmax.f32 %v1029, 0.0
    %v1258 = vmax.f32 %v1032, 0.0
    %v1259 = vmax.f32 %v1037, 0.0
    %v1260 = vmax.f32 %v1040, 0.0
    %v1261 = vmax.f32 %v1045, 0.0
    %v1262 = vmax.f32 %v1048, 0.0
    %v1263 = vmax.f32 %v1053, 0.0
    %v1264 = vmax.f32 %v1056, 0.0
    %v1265 = vmax.f32 %v1061, 0.0
    %v1266 = vmax.f32 %v1064, 0.0
    %v1267 = vmax.f32 %v1069, 0.0
    %v1268 = vmax.f32 %v1072, 0.0
    %v1269 = vmax.f32 %v1077, 0.0
    %v1270 = vmax.f32 %v1080, 0.0
    %v1271 = vmax.f32 %v1085, 0.0
    %v1272 = vmax.f32 %v1088, 0.0
    %v1273 = vmax.f32 %v1093, 0.0
    %v1274 = vmax.f32 %v1096, 0.0
    %v1275 = vmax.f32 %v1101, 0.0
    %v1276 = vmax.f32 %v1104, 0.0
    %v1277 = vmax.f32 %v1109, 0.0
    %v1278 = vmax.f32 %v1112, 0.0
    %v1279 = vmax.f32 %v1117, 0.0
    %v1280 = vmax.f32 %v1120, 0.0
    %v1281 = vmax.f32 %v1125, 0.0
    %v1282 = vmax.f32 %v1128, 0.0
    %v1283 = vmax.f32 %v1133, 0.0
    %v1284 = vmax.f32 %v1136, 0.0
    %v1285 = vmax.f32 %v1141, 0.0
    %v1286 = vmax.f32 %v1144, 0.0
    %v1287 = vmax.f32 %v1149, 0.0
    %v1288 = vmax.f32 %v1152, 0.0
    %v1289 = vmax.f32 %v1157, 0.0
    %v1290 = vmax.f32 %v1160, 0.0
    %vm1291 = vcmask 523264
    %v1292 = vsel %vm1291, %v1163, 0.0
    %v1293 = vsel %vm1291, %v1164, 0.0
    %v1294 = vadd.f32 %v1292, %v1293
    %v1295 = vsel %vm1291, %v1165, 0.0
    %v1296 = vadd.f32 %v1294, %v1295
    %v1297 = vsel %vm1291, %v1166, 0.0
    %v1298 = vadd.f32 %v1296, %v1297
    %v1299 = vsel %vm1291, %v1167, 0.0
    %v1300 = vadd.f32 %v1298, %v1299
    %v1301 = vsel %vm1291, %v1168, 0.0
    %v1302 = vadd.f32 %v1300, %v1301
    %v1303 = vsel %vm1291, %v1169, 0.0
    %v1304 = vadd.f32 %v1302, %v1303
    %v1305 = vsel %vm1291, %v1170, 0.0
    %v1306 = vadd.f32 %v1304, %v1305
    %v1307 = vsel %vm1291, %v1171, 0.0
    %v1308 = vadd.f32 %v1306, %v1307
    %v1309 = vsel %vm1291, %v1172, 0.0
    %v1310 = vadd.f32 %v1308, %v1309
    %v1311 = vsel %vm1291, %v1173, 0.0
    %v1312 = vadd.f32 %v1310, %v1311
    %v1313 = vsel %vm1291, %v1174, 0.0
    %v1314 = vadd.f32 %v1312, %v1313
    %v1315 = vsel %vm1291, %v1175, 0.0
    %v1316 = vadd.f32 %v1314, %v1315
    %v1317 = vsel %vm1291, %v1176, 0.0
    %v1318 = vadd.f32 %v1316, %v1317
    %v1319 = vsel %vm1291, %v1177, 0.0
    %v1320 = vadd.f32 %v1318, %v1319
    %v1321 = vsel %vm1291, %v1178, 0.0
    %v1322 = vadd.f32 %v1320, %v1321
    %v1323 = vrot.slane %v1322, 4
    %v1324 = vadd.f32 %v1322, %v1323
    %v1325 = vrot.slane %v1324, 2
    %v1326 = vadd.f32 %v1324, %v1325
    %v1327 = vrot.slane %v1326, 1
    %v1328 = vadd.f32 %v1326, %v1327
    %v1329 = vsel %vm1291, %v1179, 0.0
    %v1330 = vsel %vm1291, %v1180, 0.0
    %v1331 = vadd.f32 %v1329, %v1330
    %v1332 = vsel %vm1291, %v1181, 0.0
    %v1333 = vadd.f32 %v1331, %v1332
    %v1334 = vsel %vm1291, %v1182, 0.0
    %v1335 = vadd.f32 %v1333, %v1334
    %v1336 = vsel %vm1291, %v1183, 0.0
    %v1337 = vadd.f32 %v1335, %v1336
    %v1338 = vsel %vm1291, %v1184, 0.0
    %v1339 = vadd.f32 %v1337, %v1338
    %v1340 = vsel %vm1291, %v1185, 0.0
    %v1341 = vadd.f32 %v1339, %v1340
    %v1342 = vsel %vm1291, %v1186, 0.0
    %v1343 = vadd.f32 %v1341, %v1342
    %v1344 = vsel %vm1291, %v1187, 0.0
    %v1345 = vadd.f32 %v1343, %v1344
    %v1346 = vsel %vm1291, %v1188, 0.0
    %v1347 = vadd.f32 %v1345, %v1346
    %v1348 = vsel %vm1291, %v1189, 0.0
    %v1349 = vadd.f32 %v1347, %v1348
    %v1350 = vsel %vm1291, %v1190, 0.0
    %v1351 = vadd.f32 %v1349, %v1350
    %v1352 = vsel %vm1291, %v1191, 0.0
    %v1353 = vadd.f32 %v1351, %v1352
    %v1354 = vsel %vm1291, %v1192, 0.0
    %v1355 = vadd.f32 %v1353, %v1354
    %v1356 = vsel %vm1291, %v1193, 0.0
    %v1357 = vadd.f32 %v1355, %v1356
    %v1358 = vsel %vm1291, %v1194, 0.0
    %v1359 = vadd.f32 %v1357, %v1358
    %v1360 = vrot.slane %v1359, 4
    %v1361 = vadd.f32 %v1359, %v1360
    %v1362 = vrot.slane %v1361, 2
    %v1363 = vadd.f32 %v1361, %v1362
    %v1364 = vrot.slane %v1363, 1
    %v1365 = vadd.f32 %v1363, %v1364
    %v1366 = vsel %vm1291, %v1195, 0.0
    %v1367 = vsel %vm1291, %v1196, 0.0
    %v1368 = vadd.f32 %v1366, %v1367
    %v1369 = vsel %vm1291, %v1197, 0.0
    %v1370 = vadd.f32 %v1368, %v1369
    %v1371 = vsel %vm1291, %v1198, 0.0
    %v1372 = vadd.f32 %v1370, %v1371
    %v1373 = vsel %vm1291, %v1199, 0.0
    %v1374 = vadd.f32 %v1372, %v1373
    %v1375 = vsel %vm1291, %v1200, 0.0
    %v1376 = vadd.f32 %v1374, %v1375
    %v1377 = vsel %vm1291, %v1201, 0.0
    %v1378 = vadd.f32 %v1376, %v1377
    %v1379 = vsel %vm1291, %v1202, 0.0
    %v1380 = vadd.f32 %v1378, %v1379
    %v1381 = vsel %vm1291, %v1203, 0.0
    %v1382 = vadd.f32 %v1380, %v1381
    %v1383 = vsel %vm1291, %v1204, 0.0
    %v1384 = vadd.f32 %v1382, %v1383
    %v1385 = vsel %vm1291, %v1205, 0.0
    %v1386 = vadd.f32 %v1384, %v1385
    %v1387 = vsel %vm1291, %v1206, 0.0
    %v1388 = vadd.f32 %v1386, %v1387
    %v1389 = vsel %vm1291, %v1207, 0.0
    %v1390 = vadd.f32 %v1388, %v1389
    %v1391 = vsel %vm1291, %v1208, 0.0
    %v1392 = vadd.f32 %v1390, %v1391
    %v1393 = vsel %vm1291, %v1209, 0.0
    %v1394 = vadd.f32 %v1392, %v1393
    %v1395 = vsel %vm1291, %v1210, 0.0
    %v1396 = vadd.f32 %v1394, %v1395
    %v1397 = vrot.slane %v1396, 4
    %v1398 = vadd.f32 %v1396, %v1397
    %v1399 = vrot.slane %v1398, 2
    %v1400 = vadd.f32 %v1398, %v1399
    %v1401 = vrot.slane %v1400, 1
    %v1402 = vadd.f32 %v1400, %v1401
    %v1403 = vsel %vm1291, %v1211, 0.0
    %v1404 = vsel %vm1291, %v1212, 0.0
    %v1405 = vadd.f32 %v1403, %v1404
    %v1406 = vsel %vm1291, %v1213, 0.0
    %v1407 = vadd.f32 %v1405, %v1406
    %v1408 = vsel %vm1291, %v1214, 0.0
    %v1409 = vadd.f32 %v1407, %v1408
    %v1410 = vsel %vm1291, %v1215, 0.0
    %v1411 = vadd.f32 %v1409, %v1410
    %v1412 = vsel %vm1291, %v1216, 0.0
    %v1413 = vadd.f32 %v1411, %v1412
    %v1414 = vsel %vm1291, %v1217, 0.0
    %v1415 = vadd.f32 %v1413, %v1414
    %v1416 = vsel %vm1291, %v1218, 0.0
    %v1417 = vadd.f32 %v1415, %v1416
    %v1418 = vsel %vm1291, %v1219, 0.0
    %v1419 = vadd.f32 %v1417, %v1418
    %v1420 = vsel %vm1291, %v1220, 0.0
    %v1421 = vadd.f32 %v1419, %v1420
    %v1422 = vsel %vm1291, %v1221, 0.0
    %v1423 = vadd.f32 %v1421, %v1422
    %v1424 = vsel %vm1291, %v1222, 0.0
    %v1425 = vadd.f32 %v1423, %v1424
    %v1426 = vsel %vm1291, %v1223, 0.0
    %v1427 = vadd.f32 %v1425, %v1426
    %v1428 = vsel %vm1291, %v1224, 0.0
    %v1429 = vadd.f32 %v1427, %v1428
    %v1430 = vsel %vm1291, %v1225, 0.0
    %v1431 = vadd.f32 %v1429, %v1430
    %v1432 = vsel %vm1291, %v1226, 0.0
    %v1433 = vadd.f32 %v1431, %v1432
    %v1434 = vrot.slane %v1433, 4
    %v1435 = vadd.f32 %v1433, %v1434
    %v1436 = vrot.slane %v1435, 2
    %v1437 = vadd.f32 %v1435, %v1436
    %v1438 = vrot.slane %v1437, 1
    %v1439 = vadd.f32 %v1437, %v1438
    %v1440 = vsel %vm1291, %v1227, 0.0
    %v1441 = vsel %vm1291, %v1228, 0.0
    %v1442 = vadd.f32 %v1440, %v1441
    %v1443 = vsel %vm1291, %v1229, 0.0
    %v1444 = vadd.f32 %v1442, %v1443
    %v1445 = vsel %vm1291, %v1230, 0.0
    %v1446 = vadd.f32 %v1444, %v1445
    %v1447 = vsel %vm1291, %v1231, 0.0
    %v1448 = vadd.f32 %v1446, %v1447
    %v1449 = vsel %vm1291, %v1232, 0.0
    %v1450 = vadd.f32 %v1448, %v1449
    %v1451 = vsel %vm1291, %v1233, 0.0
    %v1452 = vadd.f32 %v1450, %v1451
    %v1453 = vsel %vm1291, %v1234, 0.0
    %v1454 = vadd.f32 %v1452, %v1453
    %v1455 = vsel %vm1291, %v1235, 0.0
    %v1456 = vadd.f32 %v1454, %v1455
    %v1457 = vsel %vm1291, %v1236, 0.0
    %v1458 = vadd.f32 %v1456, %v1457
    %v1459 = vsel %vm1291, %v1237, 0.0
    %v1460 = vadd.f32 %v1458, %v1459
    %v1461 = vsel %vm1291, %v1238, 0.0
    %v1462 = vadd.f32 %v1460, %v1461
    %v1463 = vsel %vm1291, %v1239, 0.0
    %v1464 = vadd.f32 %v1462, %v1463
    %v1465 = vsel %vm1291, %v1240, 0.0
    %v1466 = vadd.f32 %v1464, %v1465
    %v1467 = vsel %vm1291, %v1241, 0.0
    %v1468 = vadd.f32 %v1466, %v1467
    %v1469 = vsel %vm1291, %v1242, 0.0
    %v1470 = vadd.f32 %v1468, %v1469
    %v1471 = vrot.slane %v1470, 4
    %v1472 = vadd.f32 %v1470, %v1471
    %v1473 = vrot.slane %v1472, 2
    %v1474 = vadd.f32 %v1472, %v1473
    %v1475 = vrot.slane %v1474, 1
    %v1476 = vadd.f32 %v1474, %v1475
    %v1477 = vsel %vm1291, %v1243, 0.0
    %v1478 = vsel %vm1291, %v1244, 0.0
    %v1479 = vadd.f32 %v1477, %v1478
    %v1480 = vsel %vm1291, %v1245, 0.0
    %v1481 = vadd.f32 %v1479, %v1480
    %v1482 = vsel %vm1291, %v1246, 0.0
    %v1483 = vadd.f32 %v1481, %v1482
    %v1484 = vsel %vm1291, %v1247, 0.0
    %v1485 = vadd.f32 %v1483, %v1484
    %v1486 = vsel %vm1291, %v1248, 0.0
    %v1487 = vadd.f32 %v1485, %v1486
    %v1488 = vsel %vm1291, %v1249, 0.0
    %v1489 = vadd.f32 %v1487, %v1488
    %v1490 = vsel %vm1291, %v1250, 0.0
    %v1491 = vadd.f32 %v1489, %v1490
    %v1492 = vsel %vm1291, %v1251, 0.0
    %v1493 = vadd.f32 %v1491, %v1492
    %v1494 = vsel %vm1291, %v1252, 0.0
    %v1495 = vadd.f32 %v1493, %v1494
    %v1496 = vsel %vm1291, %v1253, 0.0
    %v1497 = vadd.f32 %v1495, %v1496
    %v1498 = vsel %vm1291, %v1254, 0.0
    %v1499 = vadd.f32 %v1497, %v1498
    %v1500 = vsel %vm1291, %v1255, 0.0
    %v1501 = vadd.f32 %v1499, %v1500
    %v1502 = vsel %vm1291, %v1256, 0.0
    %v1503 = vadd.f32 %v1501, %v1502
    %v1504 = vsel %vm1291, %v1257, 0.0
    %v1505 = vadd.f32 %v1503, %v1504
    %v1506 = vsel %vm1291, %v1258, 0.0
    %v1507 = vadd.f32 %v1505, %v1506
    %v1508 = vrot.slane %v1507, 4
    %v1509 = vadd.f32 %v1507, %v1508
    %v1510 = vrot.slane %v1509, 2
    %v1511 = vadd.f32 %v1509, %v1510
    %v1512 = vrot.slane %v1511, 1
    %v1513 = vadd.f32 %v1511, %v1512
    %v1514 = vsel %vm1291, %v1259, 0.0
    %v1515 = vsel %vm1291, %v1260, 0.0
    %v1516 = vadd.f32 %v1514, %v1515
    %v1517 = vsel %vm1291, %v1261, 0.0
    %v1518 = vadd.f32 %v1516, %v1517
    %v1519 = vsel %vm1291, %v1262, 0.0
    %v1520 = vadd.f32 %v1518, %v1519
    %v1521 = vsel %vm1291, %v1263, 0.0
    %v1522 = vadd.f32 %v1520, %v1521
    %v1523 = vsel %vm1291, %v1264, 0.0
    %v1524 = vadd.f32 %v1522, %v1523
    %v1525 = vsel %vm1291, %v1265, 0.0
    %v1526 = vadd.f32 %v1524, %v1525
    %v1527 = vsel %vm1291, %v1266, 0.0
    %v1528 = vadd.f32 %v1526, %v1527
    %v1529 = vsel %vm1291, %v1267, 0.0
    %v1530 = vadd.f32 %v1528, %v1529
    %v1531 = vsel %vm1291, %v1268, 0.0
    %v1532 = vadd.f32 %v1530, %v1531
    %v1533 = vsel %vm1291, %v1269, 0.0
    %v1534 = vadd.f32 %v1532, %v1533
    %v1535 = vsel %vm1291, %v1270, 0.0
    %v1536 = vadd.f32 %v1534, %v1535
    %v1537 = vsel %vm1291, %v1271, 0.0
    %v1538 = vadd.f32 %v1536, %v1537
    %v1539 = vsel %vm1291, %v1272, 0.0
    %v1540 = vadd.f32 %v1538, %v1539
    %v1541 = vsel %vm1291, %v1273, 0.0
    %v1542 = vadd.f32 %v1540, %v1541
    %v1543 = vsel %vm1291, %v1274, 0.0
    %v1544 = vadd.f32 %v1542, %v1543
    %v1545 = vrot.slane %v1544, 4
    %v1546 = vadd.f32 %v1544, %v1545
    %v1547 = vrot.slane %v1546, 2
    %v1548 = vadd.f32 %v1546, %v1547
    %v1549 = vrot.slane %v1548, 1
    %v1550 = vadd.f32 %v1548, %v1549
    %v1551 = vsel %vm1291, %v1275, 0.0
    %v1552 = vsel %vm1291, %v1276, 0.0
    %v1553 = vadd.f32 %v1551, %v1552
    %v1554 = vsel %vm1291, %v1277, 0.0
    %v1555 = vadd.f32 %v1553, %v1554
    %v1556 = vsel %vm1291, %v1278, 0.0
    %v1557 = vadd.f32 %v1555, %v1556
    %v1558 = vsel %vm1291, %v1279, 0.0
    %v1559 = vadd.f32 %v1557, %v1558
    %v1560 = vsel %vm1291, %v1280, 0.0
    %v1561 = vadd.f32 %v1559, %v1560
    %v1562 = vsel %vm1291, %v1281, 0.0
    %v1563 = vadd.f32 %v1561, %v1562
    %v1564 = vsel %vm1291, %v1282, 0.0
    %v1565 = vadd.f32 %v1563, %v1564
    %v1566 = vsel %vm1291, %v1283, 0.0
    %v1567 = vadd.f32 %v1565, %v1566
    %v1568 = vsel %vm1291, %v1284, 0.0
    %v1569 = vadd.f32 %v1567, %v1568
    %v1570 = vsel %vm1291, %v1285, 0.0
    %v1571 = vadd.f32 %v1569, %v1570
    %v1572 = vsel %vm1291, %v1286, 0.0
    %v1573 = vadd.f32 %v1571, %v1572
    %v1574 = vsel %vm1291, %v1287, 0.0
    %v1575 = vadd.f32 %v1573, %v1574
    %v1576 = vsel %vm1291, %v1288, 0.0
    %v1577 = vadd.f32 %v1575, %v1576
    %v1578 = vsel %vm1291, %v1289, 0.0
    %v1579 = vadd.f32 %v1577, %v1578
    %v1580 = vsel %vm1291, %v1290, 0.0
    %v1581 = vadd.f32 %v1579, %v1580
    %v1582 = vrot.slane %v1581, 4
    %v1583 = vadd.f32 %v1581, %v1582
    %v1584 = vrot.slane %v1583, 2
    %v1585 = vadd.f32 %v1583, %v1584
    %v1586 = vrot.slane %v1585, 1
    %v1587 = vadd.f32 %v1585, %v1586
    %vm1596 = vcmask 1041409
    %v1597 = vsel %vm1596, %v1365, %v1328
    %vm1598 = vcmask 1042434
    %v1599 = vsel %vm1598, %v1402, %v1597
    %vm1600 = vcmask 1043459
    %v1601 = vsel %vm1600, %v1439, %v1599
    %vm1602 = vcmask 1044484
    %v1603 = vsel %vm1602, %v1476, %v1601
    %vm1604 = vcmask 1045509
    %v1605 = vsel %vm1604, %v1513, %v1603
    %vm1606 = vcmask 1046534
    %v1607 = vsel %vm1606, %v1550, %v1605
    %vm1608 = vcmask 1047559
    %v1609 = vsel %vm1608, %v1587, %v1607
    %1610 = vrot.lane.b32.xlu0 %v1609, 32
    %v1611 = vpop.permute.xlu0 %1610
    %v1613 = vsel %vm235, %v309, %v1611
    %v1614 = vld [vmem:[%s6] sm:$0xff]
    %v1615 = vld [vmem:[%s6 + $0x8] sm:$0xff]
    %v1616 = vld [vmem:[%s6 + $0x10] sm:$0xff]
    %v1617 = vld [vmem:[%s6 + $0x18] sm:$0xff]
    %v1618 = vld [vmem:[%s6 + $0x20] sm:$0xff]
    %v1619 = vld [vmem:[%s6 + $0x28] sm:$0xff]
    %v1620 = vld [vmem:[%s6 + $0x30] sm:$0xff]
    %v1621 = vld [vmem:[%s6 + $0x38] sm:$0xff]
    %v1622 = vld [vmem:[%s6 + $0x40] sm:$0xff]
    %v1623 = vld [vmem:[%s6 + $0x48] sm:$0xff]
    %v1624 = vld [vmem:[%s6 + $0x50] sm:$0xff]
    %v1625 = vld [vmem:[%s6 + $0x58] sm:$0xff]
    %v1626 = vld [vmem:[%s7] sm:$0x1]
    %v1628 = vlaneseq
    %v1629 = vshrl.u32 %v1628, 7
    %v1630 = vsub.s32 0, %v1629
    %v1631 = vrot.slane %v1626, %v1630
    %vm1633 = vcmask 785408
    %v1635 = vsel %vm1633, %v1613, 0
    %1637 = vmatprep.subr.mxu0 0.0
    %1638 = vmatpush1.msra.mxu0 %v1614
    %1639 = vmatprep.subr.mxu0 0.0
    %1640 = vmatpush1.msra.mxu0 %v1615
    %1641 = vmatprep.subr.mxu0 0.0
    %1642 = vmatpush1.msra.mxu0 %v1616
    %1643 = vmatprep.subr.mxu0 0.0
    %1644 = vmatpush1.msra.mxu0 %v1617
    %1645 = vmatprep.subr.mxu0 0.0
    %1646 = vmatpush1.msra.mxu0 %v1618
    %1647 = vmatprep.subr.mxu0 0.0
    %1648 = vmatpush1.msra.mxu0 %v1619
    %1649 = vmatprep.subr.mxu0 0.0
    %1650 = vmatpush1.msra.mxu0 %v1620
    %1651 = vmatprep.subr.mxu0 0.0
    %1652 = vmatpush1.msra.mxu0 %v1621
    %1653 = vmatprep.subr.mxu0 0.0
    %1654 = vmatpush1.msra.mxu0 %v1622
    %1655 = vmatprep.subr.mxu0 0.0
    %1656 = vmatpush1.msra.mxu0 %v1623
    %1657 = vmatprep.subr.mxu0 0.0
    %1658 = vmatpush1.msra.mxu0 %v1624
    %1659 = vmatprep.subr.mxu0 0.0
    %1660 = vmatpush1.msra.mxu0 %v1625
    %1661 = vmatprep.subr.mxu0 0.0
    %1662 = vmatpush1.msra.mxu0 0.0
    %1663 = vmatprep.subr.mxu0 0.0
    %1664 = vmatpush1.msra.mxu0 0.0
    %1665 = vmatprep.subr.mxu0 0.0
    %1666 = vmatpush1.msra.mxu0 0.0
    %1667 = vmatprep.subr.mxu0 0.0
    %1668 = vmatpush1.msra.mxu0 0.0
    %1669 = vmatprep.subr.mxu0 0.0
    %1670 = vmatpush1.msra.mxu0 0.0
    %1671 = vmatprep.subr.mxu0 0.0
    %1672 = vmatpush1.msra.mxu0 0.0
    %1673 = vmatprep.subr.mxu0 0.0
    %1674 = vmatpush1.msra.mxu0 0.0
    %1675 = vmatprep.subr.mxu0 0.0
    %1676 = vmatpush1.msra.mxu0 0.0
    %1677 = vmatprep.subr.mxu0 0.0
    %1678 = vmatpush1.msra.mxu0 0.0
    %1679 = vmatprep.subr.mxu0 0.0
    %1680 = vmatpush1.msra.mxu0 0.0
    %1681 = vmatprep.subr.mxu0 0.0
    %1682 = vmatpush1.msra.mxu0 0.0
    %1683 = vmatprep.subr.mxu0 0.0
    %1684 = vmatpush1.msra.mxu0 0.0
    %1685 = vmatprep.subr.mxu0 0.0
    %1686 = vmatpush1.msra.mxu0 0.0
    %1687 = vmatprep.subr.mxu0 0.0
    %1688 = vmatpush1.msra.mxu0 0.0
    %1689 = vmatprep.subr.mxu0 0.0
    %1690 = vmatpush1.msra.mxu0 0.0
    %1691 = vmatprep.subr.mxu0 0.0
    %1692 = vmatpush1.msra.mxu0 0.0
    %1693 = vmatprep.subr.mxu0 0.0
    %1694 = vmatpush1.msra.mxu0 0.0
    %1695 = vmatprep.subr.mxu0 0.0
    %1696 = vmatpush1.msra.mxu0 0.0
    %1697 = vmatprep.subr.mxu0 0.0
    %1698 = vmatpush1.msra.mxu0 0.0
    %1699 = vmatprep.subr.mxu0 0.0
    %1700 = vmatpush1.msra.mxu0 0.0
    %1701 = vmatprep.mubr.f32.mxu0 0.0
    %1702 = vmatmul.mubr.f32.gmra.mrb[0].mxu0 %v1635
    %v1703 = vpop.f32.mrb[0].mxu0
    %v1704 = vadd.f32 %v1631, %v1703
    %v1705 = vpop.f32.mrb[0].mxu0
    %1706 = vdwg.mxu0
    %v1707 = vld [vmem:[%s8] sm:$0x1]
    %v1708 = vld [vmem:[%s9] sm:$0x1]
    %v1709 = vrot.slane %v1704, 4
    %v1710 = vadd.f32 %v1704, %v1709
    %v1711 = vrot.slane %v1710, 2
    %v1712 = vadd.f32 %v1710, %v1711
    %v1713 = vrot.slane %v1712, 1
    %v1714 = vadd.f32 %v1712, %v1713
    %v1715 = vrcp.pop 8.0
    %v1716 = vmul.f32 %v1714, %v1715
    %v1717 = vsub.f32 %v1704, %v1716
    %v1718 = vmul.f32 %v1717, %v1717
    %v1719 = vrot.slane %v1718, 4
    %v1720 = vadd.f32 %v1718, %v1719
    %v1721 = vrot.slane %v1720, 2
    %v1722 = vadd.f32 %v1720, %v1721
    %v1723 = vrot.slane %v1722, 1
    %v1724 = vadd.f32 %v1722, %v1723
    %v1725 = vmul.f32 %v1724, %v1715
    %v1726 = vadd.f32 %v1725, 1e-05
    %v1727 = vrsqrt.pop %v1726
    %v1728 = vmul.f32 %v1717, %v1727
    %v1730 = vlaneseq
    %v1731 = vshrl.u32 %v1730, 7
    %v1732 = vsub.s32 0, %v1731
    %v1733 = vrot.slane %v1707, %v1732
    %v1735 = vmul.f32 %v1728, %v1733
    %v1737 = vlaneseq
    %v1738 = vshrl.u32 %v1737, 7
    %v1739 = vsub.s32 0, %v1738
    %v1740 = vrot.slane %v1708, %v1739
    %v1742 = vadd.f32 %v1735, %v1740
    %v1743 = vmax.f32 %v1742, 0.0
    %v1744 = vld [vmem:[%s10] sm:$0xff]
    %v1745 = vld [vmem:[%s10 + $0x8] sm:$0xff]
    %v1746 = vld [vmem:[%s10 + $0x10] sm:$0xff]
    %v1747 = vld [vmem:[%s10 + $0x18] sm:$0xff]
    %v1748 = vld [vmem:[%s10 + $0x20] sm:$0xff]
    %v1749 = vld [vmem:[%s10 + $0x28] sm:$0xff]
    %v1750 = vld [vmem:[%s10 + $0x30] sm:$0xff]
    %v1751 = vld [vmem:[%s10 + $0x38] sm:$0xff]
    %v1752 = vld [vmem:[%s10 + $0x40] sm:$0xff]
    %v1753 = vld [vmem:[%s10 + $0x48] sm:$0xff]
    %v1754 = vld [vmem:[%s10 + $0x50] sm:$0xff]
    %v1755 = vld [vmem:[%s10 + $0x58] sm:$0xff]
    %v1756 = vld [vmem:[%s10 + $0x60] sm:$0xff]
    %v1757 = vld [vmem:[%s10 + $0x68] sm:$0xff]
    %v1758 = vld [vmem:[%s10 + $0x70] sm:$0xff]
    %v1759 = vld [vmem:[%s10 + $0x78] sm:$0xff]
    %v1760 = vld [vmem:[%s11] sm:$0x1]
    %v1762 = vlaneseq
    %v1763 = vshrl.u32 %v1762, 7
    %v1764 = vsub.s32 0, %v1763
    %v1765 = vrot.slane %v1760, %v1764
    %1767 = vmatprep.subr.mxu0 0.0
    %1768 = vmatpush1.msra.mxu0 %v1744
    %1769 = vmatprep.subr.mxu0 0.0
    %1770 = vmatpush1.msra.mxu0 %v1745
    %1771 = vmatprep.subr.mxu0 0.0
    %1772 = vmatpush1.msra.mxu0 %v1746
    %1773 = vmatprep.subr.mxu0 0.0
    %1774 = vmatpush1.msra.mxu0 %v1747
    %1775 = vmatprep.subr.mxu0 0.0
    %1776 = vmatpush1.msra.mxu0 %v1748
    %1777 = vmatprep.subr.mxu0 0.0
    %1778 = vmatpush1.msra.mxu0 %v1749
    %1779 = vmatprep.subr.mxu0 0.0
    %1780 = vmatpush1.msra.mxu0 %v1750
    %1781 = vmatprep.subr.mxu0 0.0
    %1782 = vmatpush1.msra.mxu0 %v1751
    %1783 = vmatprep.subr.mxu0 0.0
    %1784 = vmatpush1.msra.mxu0 %v1752
    %1785 = vmatprep.subr.mxu0 0.0
    %1786 = vmatpush1.msra.mxu0 %v1753
    %1787 = vmatprep.subr.mxu0 0.0
    %1788 = vmatpush1.msra.mxu0 %v1754
    %1789 = vmatprep.subr.mxu0 0.0
    %1790 = vmatpush1.msra.mxu0 %v1755
    %1791 = vmatprep.subr.mxu0 0.0
    %1792 = vmatpush1.msra.mxu0 %v1756
    %1793 = vmatprep.subr.mxu0 0.0
    %1794 = vmatpush1.msra.mxu0 %v1757
    %1795 = vmatprep.subr.mxu0 0.0
    %1796 = vmatpush1.msra.mxu0 %v1758
    %1797 = vmatprep.subr.mxu0 0.0
    %1798 = vmatpush1.msra.mxu0 %v1759
    %1799 = vmatprep.subr.mxu0 0.0
    %1800 = vmatpush1.msra.mxu0 0.0
    %1801 = vmatprep.subr.mxu0 0.0
    %1802 = vmatpush1.msra.mxu0 0.0
    %1803 = vmatprep.subr.mxu0 0.0
    %1804 = vmatpush1.msra.mxu0 0.0
    %1805 = vmatprep.subr.mxu0 0.0
    %1806 = vmatpush1.msra.mxu0 0.0
    %1807 = vmatprep.subr.mxu0 0.0
    %1808 = vmatpush1.msra.mxu0 0.0
    %1809 = vmatprep.subr.mxu0 0.0
    %1810 = vmatpush1.msra.mxu0 0.0
    %1811 = vmatprep.subr.mxu0 0.0
    %1812 = vmatpush1.msra.mxu0 0.0
    %1813 = vmatprep.subr.mxu0 0.0
    %1814 = vmatpush1.msra.mxu0 0.0
    %1815 = vmatprep.subr.mxu0 0.0
    %1816 = vmatpush1.msra.mxu0 0.0
    %1817 = vmatprep.subr.mxu0 0.0
    %1818 = vmatpush1.msra.mxu0 0.0
    %1819 = vmatprep.subr.mxu0 0.0
    %1820 = vmatpush1.msra.mxu0 0.0
    %1821 = vmatprep.subr.mxu0 0.0
    %1822 = vmatpush1.msra.mxu0 0.0
    %1823 = vmatprep.subr.mxu0 0.0
    %1824 = vmatpush1.msra.mxu0 0.0
    %1825 = vmatprep.subr.mxu0 0.0
    %1826 = vmatpush1.msra.mxu0 0.0
    %1827 = vmatprep.subr.mxu0 0.0
    %1828 = vmatpush1.msra.mxu0 0.0
    %1829 = vmatprep.subr.mxu0 0.0
    %1830 = vmatpush1.msra.mxu0 0.0
    %1831 = vmatprep.mubr.f32.mxu0 0.0
    %1832 = vmatmul.mubr.f32.gmra.mrb[0].mxu0 %v1743
    %v1833 = vpop.f32.mrb[0].mxu0
    %v1834 = vadd.f32 %v1765, %v1833
    %v1835 = vpop.f32.mrb[0].mxu0
    %1836 = vdwg.mxu0
    %v1837 = vld [vmem:[%s12] sm:$0x1]
    %v1838 = vld [vmem:[%s13] sm:$0x1]
    %v1839 = vrot.slane %v1834, 4
    %v1840 = vadd.f32 %v1834, %v1839
    %v1841 = vrot.slane %v1840, 2
    %v1842 = vadd.f32 %v1840, %v1841
    %v1843 = vrot.slane %v1842, 1
    %v1844 = vadd.f32 %v1842, %v1843
    %v1845 = vmul.f32 %v1844, %v1715
    %v1846 = vsub.f32 %v1834, %v1845
    %v1847 = vmul.f32 %v1846, %v1846
    %v1848 = vrot.slane %v1847, 4
    %v1849 = vadd.f32 %v1847, %v1848
    %v1850 = vrot.slane %v1849, 2
    %v1851 = vadd.f32 %v1849, %v1850
    %v1852 = vrot.slane %v1851, 1
    %v1853 = vadd.f32 %v1851, %v1852
    %v1854 = vmul.f32 %v1853, %v1715
    %v1855 = vadd.f32 %v1854, 1e-05
    %v1856 = vrsqrt.pop %v1855
    %v1857 = vmul.f32 %v1846, %v1856
    %v1859 = vlaneseq
    %v1860 = vshrl.u32 %v1859, 7
    %v1861 = vsub.s32 0, %v1860
    %v1862 = vrot.slane %v1837, %v1861
    %v1864 = vmul.f32 %v1857, %v1862
    %v1866 = vlaneseq
    %v1867 = vshrl.u32 %v1866, 7
    %v1868 = vsub.s32 0, %v1867
    %v1869 = vrot.slane %v1838, %v1868
    %v1871 = vadd.f32 %v1864, %v1869
    %v1872 = vmax.f32 %v1871, 0.0
    %v1873 = vld [vmem:[%s14] sm:$0xff]
    %v1874 = vld [vmem:[%s14 + $0x8] sm:$0xff]
    %v1875 = vld [vmem:[%s14 + $0x10] sm:$0xff]
    %v1876 = vld [vmem:[%s14 + $0x18] sm:$0xff]
    %v1877 = vld [vmem:[%s14 + $0x20] sm:$0xff]
    %v1878 = vld [vmem:[%s14 + $0x28] sm:$0xff]
    %v1879 = vld [vmem:[%s14 + $0x30] sm:$0xff]
    %v1880 = vld [vmem:[%s14 + $0x38] sm:$0xff]
    %v1881 = vld [vmem:[%s14 + $0x40] sm:$0xff]
    %v1882 = vld [vmem:[%s14 + $0x48] sm:$0xff]
    %v1883 = vld [vmem:[%s14 + $0x50] sm:$0xff]
    %v1884 = vld [vmem:[%s14 + $0x58] sm:$0xff]
    %v1885 = vld [vmem:[%s14 + $0x60] sm:$0xff]
    %v1886 = vld [vmem:[%s14 + $0x68] sm:$0xff]
    %v1887 = vld [vmem:[%s14 + $0x70] sm:$0xff]
    %v1888 = vld [vmem:[%s14 + $0x78] sm:$0xff]
    %v1889 = vld [vmem:[%s15] sm:$0x1]
    %v1891 = vlaneseq
    %v1892 = vshrl.u32 %v1891, 7
    %v1893 = vsub.s32 0, %v1892
    %v1894 = vrot.slane %v1889, %v1893
    %1896 = vmatprep.subr.mxu0 0.0
    %1897 = vmatpush1.msra.mxu0 %v1873
    %1898 = vmatprep.subr.mxu0 0.0
    %1899 = vmatpush1.msra.mxu0 %v1874
    %1900 = vmatprep.subr.mxu0 0.0
    %1901 = vmatpush1.msra.mxu0 %v1875
    %1902 = vmatprep.subr.mxu0 0.0
    %1903 = vmatpush1.msra.mxu0 %v1876
    %1904 = vmatprep.subr.mxu0 0.0
    %1905 = vmatpush1.msra.mxu0 %v1877
    %1906 = vmatprep.subr.mxu0 0.0
    %1907 = vmatpush1.msra.mxu0 %v1878
    %1908 = vmatprep.subr.mxu0 0.0
    %1909 = vmatpush1.msra.mxu0 %v1879
    %1910 = vmatprep.subr.mxu0 0.0
    %1911 = vmatpush1.msra.mxu0 %v1880
    %1912 = vmatprep.subr.mxu0 0.0
    %1913 = vmatpush1.msra.mxu0 %v1881
    %1914 = vmatprep.subr.mxu0 0.0
    %1915 = vmatpush1.msra.mxu0 %v1882
    %1916 = vmatprep.subr.mxu0 0.0
    %1917 = vmatpush1.msra.mxu0 %v1883
    %1918 = vmatprep.subr.mxu0 0.0
    %1919 = vmatpush1.msra.mxu0 %v1884
    %1920 = vmatprep.subr.mxu0 0.0
    %1921 = vmatpush1.msra.mxu0 %v1885
    %1922 = vmatprep.subr.mxu0 0.0
    %1923 = vmatpush1.msra.mxu0 %v1886
    %1924 = vmatprep.subr.mxu0 0.0
    %1925 = vmatpush1.msra.mxu0 %v1887
    %1926 = vmatprep.subr.mxu0 0.0
    %1927 = vmatpush1.msra.mxu0 %v1888
    %1928 = vmatprep.subr.mxu0 0.0
    %1929 = vmatpush1.msra.mxu0 0.0
    %1930 = vmatprep.subr.mxu0 0.0
    %1931 = vmatpush1.msra.mxu0 0.0
    %1932 = vmatprep.subr.mxu0 0.0
    %1933 = vmatpush1.msra.mxu0 0.0
    %1934 = vmatprep.subr.mxu0 0.0
    %1935 = vmatpush1.msra.mxu0 0.0
    %1936 = vmatprep.subr.mxu0 0.0
    %1937 = vmatpush1.msra.mxu0 0.0
    %1938 = vmatprep.subr.mxu0 0.0
    %1939 = vmatpush1.msra.mxu0 0.0
    %1940 = vmatprep.subr.mxu0 0.0
    %1941 = vmatpush1.msra.mxu0 0.0
    %1942 = vmatprep.subr.mxu0 0.0
    %1943 = vmatpush1.msra.mxu0 0.0
    %1944 = vmatprep.subr.mxu0 0.0
    %1945 = vmatpush1.msra.mxu0 0.0
    %1946 = vmatprep.subr.mxu0 0.0
    %1947 = vmatpush1.msra.mxu0 0.0
    %1948 = vmatprep.subr.mxu0 0.0
    %1949 = vmatpush1.msra.mxu0 0.0
    %1950 = vmatprep.subr.mxu0 0.0
    %1951 = vmatpush1.msra.mxu0 0.0
    %1952 = vmatprep.subr.mxu0 0.0
    %1953 = vmatpush1.msra.mxu0 0.0
    %1954 = vmatprep.subr.mxu0 0.0
    %1955 = vmatpush1.msra.mxu0 0.0
    %1956 = vmatprep.subr.mxu0 0.0
    %1957 = vmatpush1.msra.mxu0 0.0
    %1958 = vmatprep.subr.mxu0 0.0
    %1959 = vmatpush1.msra.mxu0 0.0
    %1960 = vmatprep.mubr.f32.mxu0 0.0
    %1961 = vmatmul.mubr.f32.gmra.mrb[0].mxu0 %v1872
    %v1962 = vpop.f32.mrb[0].mxu0
    %v1963 = vadd.f32 %v1894, %v1962
    %v1964 = vpop.f32.mrb[0].mxu0
    %1965 = vdwg.mxu0
    %1966 = vst.msk [vmem:[%s16] sm:$0xff] %vm1291, %v1963
    %1968 = vrot.lane.b32.xlu0 %v1963, 96
    %v1969 = vpop.permute.xlu0 %1968
    %v1971 = vsub.f32 %v1963, %v1969
    %v1972 = vmul.f32 %v1971, %v1971
    %v1973 = vsel %vm235, %v1972, 0.0
    %1974 = vadd.xlane.f32.xlu0 %v1973
    %v1975 = vpop.xlane.xlu0 %1974
    %v1976 = vrot.slane %v1975, 4
    %v1977 = vadd.f32 %v1975, %v1976
    %v1978 = vrot.slane %v1977, 2
    %v1979 = vadd.f32 %v1977, %v1978
    %v1980 = vrot.slane %v1979, 1
    %v1981 = vadd.f32 %v1979, %v1980
    %s1982 = vtos %v1981
    %v1983 = vrcp.pop 256.0
    %s1984 = vtos %v1983
    %s1985 = smul.f32 %s1982, %s1984
    %v1986 = vsel %vm1291, %v1963, 0.0
    %v1987 = vrot.slane %v1986, 4
    %v1988 = vadd.f32 %v1986, %v1987
    %v1989 = vrot.slane %v1988, 2
    %v1990 = vadd.f32 %v1988, %v1989
    %v1991 = vrot.slane %v1990, 1
    %v1992 = vadd.f32 %v1990, %v1991
    %v1993 = vmul.f32 %v1992, %v1715
    %v1994 = vsub.f32 %v1963, %v1993
    %v1995 = vmul.f32 %v1994, %v1994
    %v1996 = vsel %vm1291, %v1995, 0.0
    %v1997 = vrot.slane %v1996, 4
    %v1998 = vadd.f32 %v1996, %v1997
    %v1999 = vrot.slane %v1998, 2
    %v2000 = vadd.f32 %v1998, %v1999
    %v2001 = vrot.slane %v2000, 1
    %v2002 = vadd.f32 %v2000, %v2001
    %v2003 = vrcp.pop 7.0
    %v2004 = vmul.f32 %v2002, %v2003
    %v2005 = vadd.f32 %v2004, 0.0001
    %v2006 = vrsqrt.pop %v2005
    %v2007 = vmul.f32 %v2005, %v2006
    %vm2008 = vcmp.eq.f32.partialorder %v2005, inf
    %v2009 = vsel %vm2008, %v2005, %v2007
    %vm2010 = vcmp.eq.f32.partialorder %v2005, 0.0
    %v2011 = vand.u32 %v2005, 2147483648
    %v2012 = vsel %vm2010, %v2011, %v2009
    %v2013 = vsub.f32 1.0, %v2012
    %v2014 = vmax.f32 %v2013, 0.0
    %vm2015 = vcmask 516096
    %v2016 = vsel %vm2015, %v2014, 0.0
    %2017 = vadd.xlane.f32.xlu0 %v2016
    %v2018 = vpop.xlane.xlu0 %2017
    %v2019 = vrot.slane %v2018, 4
    %v2020 = vadd.f32 %v2018, %v2019
    %v2021 = vrot.slane %v2020, 2
    %v2022 = vadd.f32 %v2020, %v2021
    %v2023 = vrot.slane %v2022, 1
    %v2024 = vadd.f32 %v2022, %v2023
    %s2025 = vtos %v2024
    %v2026 = vrcp.pop 64.0
    %s2027 = vtos %v2026
    %s2028 = smul.f32 %s2025, %s2027
    %2029 = vxpose.xlu0.b32.start [1/16] %v1994, 128
    %2030 = vxpose.xlu0.b32.cont [2/16] 0.0, 128
    %2031 = vxpose.xlu0.b32.cont [3/16] 0.0, 128
    %2032 = vxpose.xlu0.b32.cont [4/16] 0.0, 128
    %2033 = vxpose.xlu0.b32.cont [5/16] 0.0, 128
    %2034 = vxpose.xlu0.b32.cont [6/16] 0.0, 128
    %2035 = vxpose.xlu0.b32.cont [7/16] 0.0, 128
    %2036 = vxpose.xlu0.b32.cont [8/16] 0.0, 128
    %2037 = vxpose.xlu0.b32.cont [9/16] 0.0, 128
    %2038 = vxpose.xlu0.b32.cont [10/16] 0.0, 128
    %2039 = vxpose.xlu0.b32.cont [11/16] 0.0, 128
    %2040 = vxpose.xlu0.b32.cont [12/16] 0.0, 128
    %2041 = vxpose.xlu0.b32.cont [13/16] 0.0, 128
    %2042 = vxpose.xlu0.b32.cont [14/16] 0.0, 128
    %2043 = vxpose.xlu0.b32.cont [15/16] 0.0, 128
    %2044 = vxpose.xlu0.b32.end [16/16] 0.0, 128
    %v2045 = vpop.trf.xlu0
    %v2046 = vpop.trf.xlu0
    %v2047 = vpop.trf.xlu0
    %v2048 = vpop.trf.xlu0
    %v2049 = vpop.trf.xlu0
    %v2050 = vpop.trf.xlu0
    %v2051 = vpop.trf.xlu0
    %v2052 = vpop.trf.xlu0
    %v2053 = vpop.trf.xlu0
    %v2054 = vpop.trf.xlu0
    %v2055 = vpop.trf.xlu0
    %v2056 = vpop.trf.xlu0
    %v2057 = vpop.trf.xlu0
    %v2058 = vpop.trf.xlu0
    %v2059 = vpop.trf.xlu0
    %v2060 = vpop.trf.xlu0
    %vm2061 = vcmask 64512
    %v2063 = vsel %vm2061, %v2045, 0
    %v2066 = vsel %vm2061, %v2046, 0
    %v2069 = vsel %vm2061, %v2047, 0
    %v2072 = vsel %vm2061, %v2048, 0
    %v2075 = vsel %vm2061, %v2049, 0
    %v2078 = vsel %vm2061, %v2050, 0
    %v2081 = vsel %vm2061, %v2051, 0
    %v2084 = vsel %vm2061, %v2052, 0
    %2086 = vmatprep.subr.mxu0 0.0
    %2087 = vmatpush1.msra.mxu0 %v1994
    %2088 = vmatprep.subr.mxu0 0.0
    %2089 = vmatpush1.msra.mxu0 0.0
    %2090 = vmatprep.subr.mxu0 0.0
    %2091 = vmatpush1.msra.mxu0 0.0
    %2092 = vmatprep.subr.mxu0 0.0
    %2093 = vmatpush1.msra.mxu0 0.0
    %2094 = vmatprep.subr.mxu0 0.0
    %2095 = vmatpush1.msra.mxu0 0.0
    %2096 = vmatprep.subr.mxu0 0.0
    %2097 = vmatpush1.msra.mxu0 0.0
    %2098 = vmatprep.subr.mxu0 0.0
    %2099 = vmatpush1.msra.mxu0 0.0
    %2100 = vmatprep.subr.mxu0 0.0
    %2101 = vmatpush1.msra.mxu0 0.0
    %2102 = vmatprep.subr.mxu0 0.0
    %2103 = vmatpush1.msra.mxu0 0.0
    %2104 = vmatprep.subr.mxu0 0.0
    %2105 = vmatpush1.msra.mxu0 0.0
    %2106 = vmatprep.subr.mxu0 0.0
    %2107 = vmatpush1.msra.mxu0 0.0
    %2108 = vmatprep.subr.mxu0 0.0
    %2109 = vmatpush1.msra.mxu0 0.0
    %2110 = vmatprep.subr.mxu0 0.0
    %2111 = vmatpush1.msra.mxu0 0.0
    %2112 = vmatprep.subr.mxu0 0.0
    %2113 = vmatpush1.msra.mxu0 0.0
    %2114 = vmatprep.subr.mxu0 0.0
    %2115 = vmatpush1.msra.mxu0 0.0
    %2116 = vmatprep.subr.mxu0 0.0
    %2117 = vmatpush1.msra.mxu0 0.0
    %2118 = vmatprep.subr.mxu0 0.0
    %2119 = vmatpush1.msra.mxu0 0.0
    %2120 = vmatprep.subr.mxu0 0.0
    %2121 = vmatpush1.msra.mxu0 0.0
    %2122 = vmatprep.subr.mxu0 0.0
    %2123 = vmatpush1.msra.mxu0 0.0
    %2124 = vmatprep.subr.mxu0 0.0
    %2125 = vmatpush1.msra.mxu0 0.0
    %2126 = vmatprep.subr.mxu0 0.0
    %2127 = vmatpush1.msra.mxu0 0.0
    %2128 = vmatprep.subr.mxu0 0.0
    %2129 = vmatpush1.msra.mxu0 0.0
    %2130 = vmatprep.subr.mxu0 0.0
    %2131 = vmatpush1.msra.mxu0 0.0
    %2132 = vmatprep.subr.mxu0 0.0
    %2133 = vmatpush1.msra.mxu0 0.0
    %2134 = vmatprep.subr.mxu0 0.0
    %2135 = vmatpush1.msra.mxu0 0.0
    %2136 = vmatprep.subr.mxu0 0.0
    %2137 = vmatpush1.msra.mxu0 0.0
    %2138 = vmatprep.subr.mxu0 0.0
    %2139 = vmatpush1.msra.mxu0 0.0
    %2140 = vmatprep.subr.mxu0 0.0
    %2141 = vmatpush1.msra.mxu0 0.0
    %2142 = vmatprep.subr.mxu0 0.0
    %2143 = vmatpush1.msra.mxu0 0.0
    %2144 = vmatprep.subr.mxu0 0.0
    %2145 = vmatpush1.msra.mxu0 0.0
    %2146 = vmatprep.subr.mxu0 0.0
    %2147 = vmatpush1.msra.mxu0 0.0
    %2148 = vmatprep.subr.mxu0 0.0
    %2149 = vmatpush1.msra.mxu0 0.0
    %2150 = vmatprep.mubr.f32.mxu0 0.0
    %2151 = vmatmul.mubr.f32.gmra.mrb[0].mxu0 %v2063
    %v2152 = vpop.f32.mrb[0].mxu0
    %v2153 = vadd.f32 0.0, %v2152
    %v2154 = vpop.f32.mrb[0].mxu0
    %2155 = vmatprep.mubr.f32.mxu0 0.0
    %2156 = vmatmul.mubr.f32.gmra.mrb[0].mxu0 %v2066
    %v2157 = vpop.f32.mrb[0].mxu0
    %v2158 = vadd.f32 0.0, %v2157
    %v2159 = vpop.f32.mrb[0].mxu0
    %2160 = vmatprep.mubr.f32.mxu0 0.0
    %2161 = vmatmul.mubr.f32.gmra.mrb[0].mxu0 %v2069
    %v2162 = vpop.f32.mrb[0].mxu0
    %v2163 = vadd.f32 0.0, %v2162
    %v2164 = vpop.f32.mrb[0].mxu0
    %2165 = vmatprep.mubr.f32.mxu0 0.0
    %2166 = vmatmul.mubr.f32.gmra.mrb[0].mxu0 %v2072
    %v2167 = vpop.f32.mrb[0].mxu0
    %v2168 = vadd.f32 0.0, %v2167
    %v2169 = vpop.f32.mrb[0].mxu0
    %2170 = vmatprep.mubr.f32.mxu0 0.0
    %2171 = vmatmul.mubr.f32.gmra.mrb[0].mxu0 %v2075
    %v2172 = vpop.f32.mrb[0].mxu0
    %v2173 = vadd.f32 0.0, %v2172
    %v2174 = vpop.f32.mrb[0].mxu0
    %2175 = vmatprep.mubr.f32.mxu0 0.0
    %2176 = vmatmul.mubr.f32.gmra.mrb[0].mxu0 %v2078
    %v2177 = vpop.f32.mrb[0].mxu0
    %v2178 = vadd.f32 0.0, %v2177
    %v2179 = vpop.f32.mrb[0].mxu0
    %2180 = vmatprep.mubr.f32.mxu0 0.0
    %2181 = vmatmul.mubr.f32.gmra.mrb[0].mxu0 %v2081
    %v2182 = vpop.f32.mrb[0].mxu0
    %v2183 = vadd.f32 0.0, %v2182
    %v2184 = vpop.f32.mrb[0].mxu0
    %2185 = vmatprep.mubr.f32.mxu0 0.0
    %2186 = vmatmul.mubr.f32.gmra.mrb[0].mxu0 %v2084
    %v2187 = vpop.f32.mrb[0].mxu0
    %v2188 = vadd.f32 0.0, %v2187
    %v2189 = vpop.f32.mrb[0].mxu0
    %2190 = vdwg.mxu0
    %v2191 = vmul.f32 %v2153, %v2003
    %v2192 = vmul.f32 %v2158, %v2003
    %v2193 = vmul.f32 %v2163, %v2003
    %v2194 = vmul.f32 %v2168, %v2003
    %v2195 = vmul.f32 %v2173, %v2003
    %v2196 = vmul.f32 %v2178, %v2003
    %v2197 = vmul.f32 %v2183, %v2003
    %v2198 = vmul.f32 %v2188, %v2003
    %v2199 = vlaneseq
    %v2200 = vshrl.u32 %v2199, 7
    %v2201 = vadd.s32 %v2200, 8
    %v2202 = vadd.s32 %v2200, 16
    %v2203 = vadd.s32 %v2200, 24
    %v2204 = vadd.s32 %v2200, 32
    %v2205 = vadd.s32 %v2200, 40
    %v2206 = vadd.s32 %v2200, 48
    %v2207 = vadd.s32 %v2200, 56
    %v2208 = vlaneseq
    %v2209 = vand.u32 %v2208, 127
    %vm2210 = vcmp.lt.s32.totalorder %v2200, 32
    %vm2211 = vcmp.lt.s32.totalorder %v2201, 32
    %vm2212 = vcmp.lt.s32.totalorder %v2202, 32
    %vm2213 = vcmp.lt.s32.totalorder %v2203, 32
    %vm2214 = vcmp.lt.s32.totalorder %v2204, 32
    %vm2215 = vcmp.lt.s32.totalorder %v2205, 32
    %vm2216 = vcmp.lt.s32.totalorder %v2206, 32
    %vm2217 = vcmp.lt.s32.totalorder %v2207, 32
    %vm2218 = vcmp.lt.s32.totalorder %v2209, 32
    %vm2219 = vmxor %vm2210, %vm2218
    %vm2220 = vmxor %vm2211, %vm2218
    %vm2221 = vmxor %vm2212, %vm2218
    %vm2222 = vmxor %vm2213, %vm2218
    %vm2223 = vmxor %vm2214, %vm2218
    %vm2224 = vmxor %vm2215, %vm2218
    %vm2225 = vmxor %vm2216, %vm2218
    %vm2226 = vmxor %vm2217, %vm2218
    %vm2227 = vmxor %vm2219, 1
    %vm2228 = vmxor %vm2220, 1
    %vm2229 = vmxor %vm2221, 1
    %vm2230 = vmxor %vm2222, 1
    %vm2231 = vmxor %vm2223, 1
    %vm2232 = vmxor %vm2224, 1
    %vm2233 = vmxor %vm2225, 1
    %vm2234 = vmxor %vm2226, 1
    %v2235 = vmul.f32 %v2191, %v2191
    %v2236 = vmul.f32 %v2192, %v2192
    %v2237 = vmul.f32 %v2193, %v2193
    %v2238 = vmul.f32 %v2194, %v2194
    %v2239 = vmul.f32 %v2195, %v2195
    %v2240 = vmul.f32 %v2196, %v2196
    %v2241 = vmul.f32 %v2197, %v2197
    %v2242 = vmul.f32 %v2198, %v2198
    %v2243 = vsel %vm2227, %v2235, 0.0
    %v2244 = vsel %vm2228, %v2236, 0.0
    %v2245 = vsel %vm2229, %v2237, 0.0
    %v2246 = vsel %vm2230, %v2238, 0.0
    %v2247 = vsel %vm2231, %v2239, 0.0
    %v2248 = vsel %vm2232, %v2240, 0.0
    %v2249 = vsel %vm2233, %v2241, 0.0
    %v2250 = vsel %vm2234, %v2242, 0.0
    %v2251 = vsel %vm1291, %v2243, 0.0
    %v2252 = vsel %vm1291, %v2244, 0.0
    %v2253 = vadd.f32 %v2251, %v2252
    %v2254 = vsel %vm1291, %v2245, 0.0
    %v2255 = vadd.f32 %v2253, %v2254
    %v2256 = vsel %vm1291, %v2246, 0.0
    %v2257 = vadd.f32 %v2255, %v2256
    %v2258 = vsel %vm1291, %v2247, 0.0
    %v2259 = vadd.f32 %v2257, %v2258
    %v2260 = vsel %vm1291, %v2248, 0.0
    %v2261 = vadd.f32 %v2259, %v2260
    %v2262 = vsel %vm1291, %v2249, 0.0
    %v2263 = vadd.f32 %v2261, %v2262
    %v2264 = vsel %vm1291, %v2250, 0.0
    %v2265 = vadd.f32 %v2263, %v2264
    %2266 = vadd.xlane.f32.xlu0 %v2265
    %v2267 = vpop.xlane.xlu0 %2266
    %v2268 = vrot.slane %v2267, 4
    %v2269 = vadd.f32 %v2267, %v2268
    %v2270 = vrot.slane %v2269, 2
    %v2271 = vadd.f32 %v2269, %v2270
    %v2272 = vrot.slane %v2271, 1
    %v2273 = vadd.f32 %v2271, %v2272
    %s2274 = vtos %v2273
    %v2275 = vmul.f32 %v2004, %v2004
    %v2276 = vsel %vm2015, %v2275, 0.0
    %2277 = vadd.xlane.f32.xlu0 %v2276
    %v2278 = vpop.xlane.xlu0 %2277
    %v2279 = vrot.slane %v2278, 4
    %v2280 = vadd.f32 %v2278, %v2279
    %v2281 = vrot.slane %v2280, 2
    %v2282 = vadd.f32 %v2280, %v2281
    %v2283 = vrot.slane %v2282, 1
    %v2284 = vadd.f32 %v2282, %v2283
    %s2285 = vtos %v2284
    %s2286 = ssub.f32 %s2274, %s2285
    %v2287 = vrcp.pop 32.0
    %s2288 = vtos %v2287
    %s2289 = smul.f32 %s2286, %s2288
    %s2290 = smul.f32 %s1985, 25.0
    %s2291 = smul.f32 %s2028, 25.0
    %s2292 = sadd.f32 %s2290, %s2291
    %s2293 = sadd.f32 %s2292, %s2289
    %s2294 = scalar_lea.smem [#allocation4], 0
    %2295 = sst [smem:[%s2294]] %s2293
    // Predicated region
    $region96: #{vicreg_forward.1} parent=1 // pred_check
      _
    $region97: #{vicreg_forward.1} parent=1 // pred_check_branch
      %2297 = sbr.rel (0) target = $region99
    $region98: #{vicreg_forward.1} parent=1 // pred_region
      _
    $region99: #{vicreg_forward.1} parent=1 // pred_fallthru
      _
    // Predicated region
    $region100: #{vicreg_forward.1} parent=1 // pred_check
      _
    $region101: #{vicreg_forward.1} parent=1 // pred_check_branch
      %2299 = sbr.rel (0) target = $region103
    $region102: #{vicreg_forward.1} parent=1 // pred_region
      %s2301 = ssub.s32 16, 16
      %2302 = vsyncadd [#allocation5], %s2301
      %2305 = dma.smem_to_hbm [#allocation4], 16, %s17, [#allocation5]
    $region103: #{vicreg_forward.1} parent=1 // pred_fallthru
      _
    // Predicated region
    $region104: #{vicreg_forward.1} parent=1 // pred_check
      _
    $region105: #{vicreg_forward.1} parent=1 // pred_check_branch
      %2307 = sbr.rel (0) target = $region107
    $region106: #{vicreg_forward.1} parent=1 // pred_region
      _
    $region107: #{vicreg_forward.1} parent=1 // pred_fallthru
      _
    // Predicated region
    $region108: #{vicreg_forward.1} parent=1 // pred_check
      _
    $region109: #{vicreg_forward.1} parent=1 // pred_check_branch
      %2309 = sbr.rel (0) target = $region111
    $region110: #{vicreg_forward.1} parent=1 // pred_region
      %2310 = dma.done [#allocation5], 16
    $region111: #{vicreg_forward.1} parent=1 // pred_fallthru
      _
    %2311 = sfence
    %2312 = vsyncpa [#allocation5], 1
  %2313 = vsyncmov [#allocation3]
  %s2314 = vpop.sfrf %2313
  %p2315 = scmp.eq.s32.totalorder %s2314, 0
  %p2316 = pneg %p2315
  %2318 = shalt.err (%p2316)

</llo_original>
